<compile_context>
chip_gen: v6e
topology: v6e:2x2x1
jax: 0.10.0
libtpu: 0.0.40
codegen_flags: <defaults>
</compile_context>

<pallas_src>
import jax
import jax.numpy as jnp
from jax.experimental import pallas as pl
from jax.experimental.pallas import tpu as pltpu


def _lr_tb_kernel(x_ref, wdw_lr_ref, wdw_tb_ref, wlr_ref, wtb_ref,
                  blr_ref, btb_ref, out_ref, xp_ref, dlr_ref, dtb_ref):
    # x_ref block: (1, C, H, W) in the input's native dtype (VMEM)
    # wdw_*_ref : (C*9,)    f32 SMEM  (per-channel 3x3 depthwise taps)
    # wlr_ref   : (2*C*3,)  f32 SMEM  (1x3 head taps, index o*C*3 + c*3 + dj)
    # wtb_ref   : (2*C*3,)  f32 SMEM  (3x1 head taps, index o*C*3 + c*3 + di)
    # blr/btb   : (2,)      f32 SMEM
    # scratch: xp (H+2,W+2), dlr (H,W+2), dtb (H+2,W)  f32 VMEM
    C = x_ref.shape[1]
    H = x_ref.shape[2]
    W = x_ref.shape[3]

    # Zero padded scratch once per grid step (halos stay zero; interiors are
    # overwritten per channel).  Unconditional so megacore grid sharding on
    # v7x cannot skip the init.
    xp_ref[...] = jnp.zeros_like(xp_ref)
    dlr_ref[...] = jnp.zeros_like(dlr_ref)
    dtb_ref[...] = jnp.zeros_like(dtb_ref)

    # Output accumulators (seeded with bias), kept in vregs across channels.
    lr0 = jnp.zeros((H, W), jnp.float32) + blr_ref[0]
    lr1 = jnp.zeros((H, W), jnp.float32) + blr_ref[1]
    tb0 = jnp.zeros((H, W), jnp.float32) + btb_ref[0]
    tb1 = jnp.zeros((H, W), jnp.float32) + btb_ref[1]

    for c in range(C):
        # Stage the zero-padded channel slice once; shared by BOTH depthwise
        # convs.  Upcast to f32 in-kernel (input may arrive as bf16).
        xp_ref[pl.ds(1, H), pl.ds(1, W)] = x_ref[0, c].astype(jnp.float32)
        xp = xp_ref[...]                                   # (H+2, W+2)

        # Two 3x3 depthwise convs with scalar-operand vector muls.
        acc_lr = jnp.zeros((H, W), jnp.float32)
        acc_tb = jnp.zeros((H, W), jnp.float32)
        base = c * 9
        for di in range(3):
            for dj in range(3):
                win = xp[di:di + H, dj:dj + W]
                acc_lr = acc_lr + wdw_lr_ref[base + di * 3 + dj] * win
                acc_tb = acc_tb + wdw_tb_ref[base + di * 3 + dj] * win

        # Stage depthwise results directly into the interiors of the
        # W- / H-padded buffers used by the (1,3) / (3,1) heads.
        dlr_ref[:, pl.ds(1, W)] = acc_lr
        dtb_ref[pl.ds(1, H), :] = acc_tb
        dlr = dlr_ref[...]                                 # (H, W+2)
        dtb = dtb_ref[...]                                 # (H+2, W)

        # LR head: (1,3) conv over W, C -> 2 (accumulate across channels).
        b0 = (0 * C + c) * 3
        b1 = (1 * C + c) * 3
        for dj in range(3):
            win = dlr[:, dj:dj + W]
            lr0 = lr0 + wlr_ref[b0 + dj] * win
            lr1 = lr1 + wlr_ref[b1 + dj] * win
        # TB head: (3,1) conv over H, C -> 2.
        for di in range(3):
            win = dtb[di:di + H, :]
            tb0 = tb0 + wtb_ref[b0 + di] * win
            tb1 = tb1 + wtb_ref[b1 + di] * win

    # ltrb = stack([lr0, tb0, lr1, tb1], dim=1): single (4,H,W) store.
    out_ref[0] = jnp.stack([lr0, tb0, lr1, tb1], axis=0)


def lr_tb_last_pallas(x, params):
    N, C, H, W = x.shape
    f32 = jnp.float32

    # Flatten weights to 1-D f32 for SMEM (tap index layouts match kernel):
    #   depthwise (C,1,3,3) -> (C*9,)       idx = c*9 + di*3 + dj
    #   pointwise (2,C,1,3)/(2,C,3,1) -> (2*C*3,)  idx = o*C*3 + c*3 + d
    wdw_lr = params["wdw_lr"].astype(f32).reshape(C * 9)
    wdw_tb = params["wdw_tb"].astype(f32).reshape(C * 9)
    wlr = params["wlr"].astype(f32).reshape(2 * C * 3)
    wtb = params["wtb"].astype(f32).reshape(2 * C * 3)
    blr = params["blr"].astype(f32).reshape(2)
    btb = params["btb"].astype(f32).reshape(2)

    smem = pl.BlockSpec(memory_space=pltpu.MemorySpace.SMEM)

    return pl.pallas_call(
        _lr_tb_kernel,
        out_shape=jax.ShapeDtypeStruct((N, 4, H, W), f32),
        grid=(N,),
        in_specs=[
            pl.BlockSpec((1, C, H, W), lambda b: (b, 0, 0, 0)),
            smem, smem, smem, smem, smem, smem,
        ],
        out_specs=pl.BlockSpec((1, 4, H, W), lambda b: (b, 0, 0, 0)),
        scratch_shapes=[
            pltpu.VMEM((H + 2, W + 2), f32),   # padded input channel
            pltpu.VMEM((H, W + 2), f32),       # W-padded depthwise (LR)
            pltpu.VMEM((H + 2, W), f32),       # H-padded depthwise (TB)
        ],
        compiler_params=pltpu.CompilerParams(
            dimension_semantics=("parallel",)),
    )(x, wdw_lr, wdw_tb, wlr, wtb, blr, btb)


def ref_forward(x, params):
    """Pure-JAX reference matching the PyTorch module."""
    C = x.shape[1]
    dn = ("NCHW", "OIHW", "NCHW")
    dw_lr = jax.lax.conv_general_dilated(
        x, params["wdw_lr"], (1, 1), ((1, 1), (1, 1)),
        dimension_numbers=dn, feature_group_count=C)
    lr = jax.lax.conv_general_dilated(
        dw_lr, params["wlr"], (1, 1), ((0, 0), (1, 1)), dimension_numbers=dn)
    lr = lr + params["blr"][None, :, None, None]
    dw_tb = jax.lax.conv_general_dilated(
        x, params["wdw_tb"], (1, 1), ((1, 1), (1, 1)),
        dimension_numbers=dn, feature_group_count=C)
    tb = jax.lax.conv_general_dilated(
        dw_tb, params["wtb"], (1, 1), ((1, 1), (0, 0)), dimension_numbers=dn)
    tb = tb + params["btb"][None, :, None, None]
    return jnp.stack([lr[:, 0], tb[:, 0], lr[:, 1], tb[:, 1]], axis=1)


if __name__ == "__main__":
    key = jax.random.PRNGKey(0)
    N, C, H, W = 2, 4, 16, 16
    ks = jax.random.split(key, 7)
    x = jax.random.normal(ks[0], (N, C, H, W), jnp.float32)
    params = {
        # nn.Conv2d(in_ch, in_ch, 3, groups=in_ch, bias=False) -> (C,1,3,3)
        "wdw_lr": jax.random.normal(ks[1], (C, 1, 3, 3), jnp.float32) * 0.3,
        "wdw_tb": jax.random.normal(ks[2], (C, 1, 3, 3), jnp.float32) * 0.3,
        # nn.Conv2d(in_ch, 2, (1,3), padding=(0,1)) -> (2,C,1,3) + bias (2,)
        "wlr": jax.random.normal(ks[3], (2, C, 1, 3), jnp.float32) * 0.3,
        "blr": jax.random.normal(ks[5], (2,), jnp.float32) * 0.1,
        # nn.Conv2d(in_ch, 2, (3,1), padding=(1,0)) -> (2,C,3,1) + bias (2,)
        "wtb": jax.random.normal(ks[4], (2, C, 3, 1), jnp.float32) * 0.3,
        "btb": jax.random.normal(ks[6], (2,), jnp.float32) * 0.1,
    }

    out = jax.block_until_ready(lr_tb_last_pallas(x, params))
    ref = jax.block_until_ready(ref_forward(x, params))

    assert out.shape == (N, 4, H, W), out.shape
    max_err = float(jnp.max(jnp.abs(out - ref)))
    assert jnp.allclose(out, ref, atol=1e-4, rtol=1e-4), max_err
    print("KERNEL_OK")
</pallas_src>

<mosaic_0001>
module attributes {stable_mosaic.version = 11 : i64} {
  func.func @_lr_tb_kernel(%arg0: i32, %arg1: memref<1x4x16x16xf32, #tpu.memory_space<vmem>>, %arg2: memref<36xf32, #tpu.memory_space<smem>>, %arg3: memref<36xf32, #tpu.memory_space<smem>>, %arg4: memref<24xf32, #tpu.memory_space<smem>>, %arg5: memref<24xf32, #tpu.memory_space<smem>>, %arg6: memref<2xf32, #tpu.memory_space<smem>>, %arg7: memref<2xf32, #tpu.memory_space<smem>>, %arg8: memref<1x4x16x16xf32, #tpu.memory_space<vmem>>, %arg9: memref<18x18xf32, #tpu.memory_space<vmem>>, %arg10: memref<16x18xf32, #tpu.memory_space<vmem>>, %arg11: memref<18x16xf32, #tpu.memory_space<vmem>>) attributes {dimension_semantics = [#tpu.dimension_semantics<parallel>], iteration_bounds = array<i64: 2>, scalar_prefetch = 0 : i64, scratch_operands = 3 : i64, tpu.core_type = #tpu.core_type<tc>, window_params = [{transform_indices = @transform_0, window_bounds = array<i64: 1, 4, 16, 16>}, {transform_indices = @transform_1, window_bounds = array<i64: 36>}, {transform_indices = @transform_2, window_bounds = array<i64: 36>}, {transform_indices = @transform_3, window_bounds = array<i64: 24>}, {transform_indices = @transform_4, window_bounds = array<i64: 24>}, {transform_indices = @transform_5, window_bounds = array<i64: 2>}, {transform_indices = @transform_6, window_bounds = array<i64: 2>}, {transform_indices = @transform_7, window_bounds = array<i64: 1, 4, 16, 16>}]} {
    %cst = arith.constant 0.000000e+00 : f32
    %0 = vector.broadcast %cst : f32 to vector<18x18xf32>
    %c0 = arith.constant 0 : index
    %c0_0 = arith.constant 0 : index
    %1 = vector.load %arg9[%c0, %c0_0] : memref<18x18xf32, #tpu.memory_space<vmem>>, vector<18x18xf32>
    tpu.vector_store %arg9[%c0, %c0_0], %0 {strides = array<i32>} : memref<18x18xf32, #tpu.memory_space<vmem>>, vector<18x18xf32>,
    %cst_1 = arith.constant 0.000000e+00 : f32
    %2 = vector.broadcast %cst_1 : f32 to vector<16x18xf32>
    %c0_2 = arith.constant 0 : index
    %c0_3 = arith.constant 0 : index
    %3 = vector.load %arg10[%c0_2, %c0_3] : memref<16x18xf32, #tpu.memory_space<vmem>>, vector<16x18xf32>
    tpu.vector_store %arg10[%c0_2, %c0_3], %2 {strides = array<i32>} : memref<16x18xf32, #tpu.memory_space<vmem>>, vector<16x18xf32>,
    %cst_4 = arith.constant 0.000000e+00 : f32
    %4 = vector.broadcast %cst_4 : f32 to vector<18x16xf32>
    %c0_5 = arith.constant 0 : index
    %c0_6 = arith.constant 0 : index
    %5 = vector.load %arg11[%c0_5, %c0_6] : memref<18x16xf32, #tpu.memory_space<vmem>>, vector<18x16xf32>
    tpu.vector_store %arg11[%c0_5, %c0_6], %4 {strides = array<i32>} : memref<18x16xf32, #tpu.memory_space<vmem>>, vector<18x16xf32>,
    %cst_7 = arith.constant 0.000000e+00 : f32
    %6 = vector.broadcast %cst_7 : f32 to vector<16x16xf32>
    %c0_8 = arith.constant 0 : index
    %7 = memref.load %arg6[%c0_8] : memref<2xf32, #tpu.memory_space<smem>>
    %8 = vector.broadcast %7 : f32 to vector<16x16xf32>
    %9 = arith.addf %6, %8 : vector<16x16xf32>
    %cst_9 = arith.constant 0.000000e+00 : f32
    %10 = vector.broadcast %cst_9 : f32 to vector<16x16xf32>
    %c1 = arith.constant 1 : index
    %11 = memref.load %arg6[%c1] : memref<2xf32, #tpu.memory_space<smem>>
    %12 = vector.broadcast %11 : f32 to vector<16x16xf32>
    %13 = arith.addf %10, %12 : vector<16x16xf32>
    %cst_10 = arith.constant 0.000000e+00 : f32
    %14 = vector.broadcast %cst_10 : f32 to vector<16x16xf32>
    %c0_11 = arith.constant 0 : index
    %15 = memref.load %arg7[%c0_11] : memref<2xf32, #tpu.memory_space<smem>>
    %16 = vector.broadcast %15 : f32 to vector<16x16xf32>
    %17 = arith.addf %14, %16 : vector<16x16xf32>
    %cst_12 = arith.constant 0.000000e+00 : f32
    %18 = vector.broadcast %cst_12 : f32 to vector<16x16xf32>
    %c1_13 = arith.constant 1 : index
    %19 = memref.load %arg7[%c1_13] : memref<2xf32, #tpu.memory_space<smem>>
    %20 = vector.broadcast %19 : f32 to vector<16x16xf32>
    %21 = arith.addf %18, %20 : vector<16x16xf32>
    %c0_14 = arith.constant 0 : index
    %c0_15 = arith.constant 0 : index
    %c0_16 = arith.constant 0 : index
    %c0_17 = arith.constant 0 : index
    %22 = vector.load %arg1[%c0_14, %c0_15, %c0_16, %c0_17] : memref<1x4x16x16xf32, #tpu.memory_space<vmem>>, vector<1x1x16x16xf32>
    %23 = vector.shape_cast %22 : vector<1x1x16x16xf32> to vector<16x16xf32>
    %c1_18 = arith.constant 1 : index
    %c1_19 = arith.constant 1 : index
    %24 = vector.load %arg9[%c1_18, %c1_19] : memref<18x18xf32, #tpu.memory_space<vmem>>, vector<16x16xf32>
    tpu.vector_store %arg9[%c1_18, %c1_19], %23 {strides = array<i32>} : memref<18x18xf32, #tpu.memory_space<vmem>>, vector<16x16xf32>,
    %c0_20 = arith.constant 0 : index
    %c0_21 = arith.constant 0 : index
    %25 = vector.load %arg9[%c0_20, %c0_21] : memref<18x18xf32, #tpu.memory_space<vmem>>, vector<18x18xf32>
    %cst_22 = arith.constant 0.000000e+00 : f32
    %26 = vector.broadcast %cst_22 : f32 to vector<16x16xf32>
    %cst_23 = arith.constant 0.000000e+00 : f32
    %27 = vector.broadcast %cst_23 : f32 to vector<16x16xf32>
    %28 = vector.extract_strided_slice %25 {offsets = [0, 0], sizes = [16, 16], strides = [1, 1]} : vector<18x18xf32> to vector<16x16xf32>
    %c0_24 = arith.constant 0 : index
    %29 = memref.load %arg2[%c0_24] : memref<36xf32, #tpu.memory_space<smem>>
    %30 = vector.broadcast %29 : f32 to vector<16x16xf32>
    %31 = arith.mulf %30, %28 : vector<16x16xf32>
    %32 = arith.addf %26, %31 : vector<16x16xf32>
    %c0_25 = arith.constant 0 : index
    %33 = memref.load %arg3[%c0_25] : memref<36xf32, #tpu.memory_space<smem>>
    %34 = vector.broadcast %33 : f32 to vector<16x16xf32>
    %35 = arith.mulf %34, %28 : vector<16x16xf32>
    %36 = arith.addf %27, %35 : vector<16x16xf32>
    %37 = vector.extract_strided_slice %25 {offsets = [0, 1], sizes = [16, 16], strides = [1, 1]} : vector<18x18xf32> to vector<16x16xf32>
    %c1_26 = arith.constant 1 : index
    %38 = memref.load %arg2[%c1_26] : memref<36xf32, #tpu.memory_space<smem>>
    %39 = vector.broadcast %38 : f32 to vector<16x16xf32>
    %40 = arith.mulf %39, %37 : vector<16x16xf32>
    %41 = arith.addf %32, %40 : vector<16x16xf32>
    %c1_27 = arith.constant 1 : index
    %42 = memref.load %arg3[%c1_27] : memref<36xf32, #tpu.memory_space<smem>>
    %43 = vector.broadcast %42 : f32 to vector<16x16xf32>
    %44 = arith.mulf %43, %37 : vector<16x16xf32>
    %45 = arith.addf %36, %44 : vector<16x16xf32>
    %46 = vector.extract_strided_slice %25 {offsets = [0, 2], sizes = [16, 16], strides = [1, 1]} : vector<18x18xf32> to vector<16x16xf32>
    %c2 = arith.constant 2 : index
    %47 = memref.load %arg2[%c2] : memref<36xf32, #tpu.memory_space<smem>>
    %48 = vector.broadcast %47 : f32 to vector<16x16xf32>
    %49 = arith.mulf %48, %46 : vector<16x16xf32>
    %50 = arith.addf %41, %49 : vector<16x16xf32>
    %c2_28 = arith.constant 2 : index
    %51 = memref.load %arg3[%c2_28] : memref<36xf32, #tpu.memory_space<smem>>
    %52 = vector.broadcast %51 : f32 to vector<16x16xf32>
    %53 = arith.mulf %52, %46 : vector<16x16xf32>
    %54 = arith.addf %45, %53 : vector<16x16xf32>
    %55 = vector.extract_strided_slice %25 {offsets = [1, 0], sizes = [16, 16], strides = [1, 1]} : vector<18x18xf32> to vector<16x16xf32>
    %c3 = arith.constant 3 : index
    %56 = memref.load %arg2[%c3] : memref<36xf32, #tpu.memory_space<smem>>
    %57 = vector.broadcast %56 : f32 to vector<16x16xf32>
    %58 = arith.mulf %57, %55 : vector<16x16xf32>
    %59 = arith.addf %50, %58 : vector<16x16xf32>
    %c3_29 = arith.constant 3 : index
    %60 = memref.load %arg3[%c3_29] : memref<36xf32, #tpu.memory_space<smem>>
    %61 = vector.broadcast %60 : f32 to vector<16x16xf32>
    %62 = arith.mulf %61, %55 : vector<16x16xf32>
    %63 = arith.addf %54, %62 : vector<16x16xf32>
    %64 = vector.extract_strided_slice %25 {offsets = [1, 1], sizes = [16, 16], strides = [1, 1]} : vector<18x18xf32> to vector<16x16xf32>
    %c4 = arith.constant 4 : index
    %65 = memref.load %arg2[%c4] : memref<36xf32, #tpu.memory_space<smem>>
    %66 = vector.broadcast %65 : f32 to vector<16x16xf32>
    %67 = arith.mulf %66, %64 : vector<16x16xf32>
    %68 = arith.addf %59, %67 : vector<16x16xf32>
    %c4_30 = arith.constant 4 : index
    %69 = memref.load %arg3[%c4_30] : memref<36xf32, #tpu.memory_space<smem>>
    %70 = vector.broadcast %69 : f32 to vector<16x16xf32>
    %71 = arith.mulf %70, %64 : vector<16x16xf32>
    %72 = arith.addf %63, %71 : vector<16x16xf32>
    %73 = vector.extract_strided_slice %25 {offsets = [1, 2], sizes = [16, 16], strides = [1, 1]} : vector<18x18xf32> to vector<16x16xf32>
    %c5 = arith.constant 5 : index
    %74 = memref.load %arg2[%c5] : memref<36xf32, #tpu.memory_space<smem>>
    %75 = vector.broadcast %74 : f32 to vector<16x16xf32>
    %76 = arith.mulf %75, %73 : vector<16x16xf32>
    %77 = arith.addf %68, %76 : vector<16x16xf32>
    %c5_31 = arith.constant 5 : index
    %78 = memref.load %arg3[%c5_31] : memref<36xf32, #tpu.memory_space<smem>>
    %79 = vector.broadcast %78 : f32 to vector<16x16xf32>
    %80 = arith.mulf %79, %73 : vector<16x16xf32>
    %81 = arith.addf %72, %80 : vector<16x16xf32>
    %82 = vector.extract_strided_slice %25 {offsets = [2, 0], sizes = [16, 16], strides = [1, 1]} : vector<18x18xf32> to vector<16x16xf32>
    %c6 = arith.constant 6 : index
    %83 = memref.load %arg2[%c6] : memref<36xf32, #tpu.memory_space<smem>>
    %84 = vector.broadcast %83 : f32 to vector<16x16xf32>
    %85 = arith.mulf %84, %82 : vector<16x16xf32>
    %86 = arith.addf %77, %85 : vector<16x16xf32>
    %c6_32 = arith.constant 6 : index
    %87 = memref.load %arg3[%c6_32] : memref<36xf32, #tpu.memory_space<smem>>
    %88 = vector.broadcast %87 : f32 to vector<16x16xf32>
    %89 = arith.mulf %88, %82 : vector<16x16xf32>
    %90 = arith.addf %81, %89 : vector<16x16xf32>
    %91 = vector.extract_strided_slice %25 {offsets = [2, 1], sizes = [16, 16], strides = [1, 1]} : vector<18x18xf32> to vector<16x16xf32>
    %c7 = arith.constant 7 : index
    %92 = memref.load %arg2[%c7] : memref<36xf32, #tpu.memory_space<smem>>
    %93 = vector.broadcast %92 : f32 to vector<16x16xf32>
    %94 = arith.mulf %93, %91 : vector<16x16xf32>
    %95 = arith.addf %86, %94 : vector<16x16xf32>
    %c7_33 = arith.constant 7 : index
    %96 = memref.load %arg3[%c7_33] : memref<36xf32, #tpu.memory_space<smem>>
    %97 = vector.broadcast %96 : f32 to vector<16x16xf32>
    %98 = arith.mulf %97, %91 : vector<16x16xf32>
    %99 = arith.addf %90, %98 : vector<16x16xf32>
    %100 = vector.extract_strided_slice %25 {offsets = [2, 2], sizes = [16, 16], strides = [1, 1]} : vector<18x18xf32> to vector<16x16xf32>
    %c8 = arith.constant 8 : index
    %101 = memref.load %arg2[%c8] : memref<36xf32, #tpu.memory_space<smem>>
    %102 = vector.broadcast %101 : f32 to vector<16x16xf32>
    %103 = arith.mulf %102, %100 : vector<16x16xf32>
    %104 = arith.addf %95, %103 : vector<16x16xf32>
    %c8_34 = arith.constant 8 : index
    %105 = memref.load %arg3[%c8_34] : memref<36xf32, #tpu.memory_space<smem>>
    %106 = vector.broadcast %105 : f32 to vector<16x16xf32>
    %107 = arith.mulf %106, %100 : vector<16x16xf32>
    %108 = arith.addf %99, %107 : vector<16x16xf32>
    %c0_35 = arith.constant 0 : index
    %c1_36 = arith.constant 1 : index
    %109 = vector.load %arg10[%c0_35, %c1_36] : memref<16x18xf32, #tpu.memory_space<vmem>>, vector<16x16xf32>
    tpu.vector_store %arg10[%c0_35, %c1_36], %104 {strides = array<i32>} : memref<16x18xf32, #tpu.memory_space<vmem>>, vector<16x16xf32>,
    %c1_37 = arith.constant 1 : index
    %c0_38 = arith.constant 0 : index
    %110 = vector.load %arg11[%c1_37, %c0_38] : memref<18x16xf32, #tpu.memory_space<vmem>>, vector<16x16xf32>
    tpu.vector_store %arg11[%c1_37, %c0_38], %108 {strides = array<i32>} : memref<18x16xf32, #tpu.memory_space<vmem>>, vector<16x16xf32>,
    %c0_39 = arith.constant 0 : index
    %c0_40 = arith.constant 0 : index
    %111 = vector.load %arg10[%c0_39, %c0_40] : memref<16x18xf32, #tpu.memory_space<vmem>>, vector<16x18xf32>
    %c0_41 = arith.constant 0 : index
    %c0_42 = arith.constant 0 : index
    %112 = vector.load %arg11[%c0_41, %c0_42] : memref<18x16xf32, #tpu.memory_space<vmem>>, vector<18x16xf32>
    %113 = vector.extract_strided_slice %111 {offsets = [0, 0], sizes = [16, 16], strides = [1, 1]} : vector<16x18xf32> to vector<16x16xf32>
    %c0_43 = arith.constant 0 : index
    %114 = memref.load %arg4[%c0_43] : memref<24xf32, #tpu.memory_space<smem>>
    %115 = vector.broadcast %114 : f32 to vector<16x16xf32>
    %116 = arith.mulf %115, %113 : vector<16x16xf32>
    %117 = arith.addf %9, %116 : vector<16x16xf32>
    %c12 = arith.constant 12 : index
    %118 = memref.load %arg4[%c12] : memref<24xf32, #tpu.memory_space<smem>>
    %119 = vector.broadcast %118 : f32 to vector<16x16xf32>
    %120 = arith.mulf %119, %113 : vector<16x16xf32>
    %121 = arith.addf %13, %120 : vector<16x16xf32>
    %122 = vector.extract_strided_slice %111 {offsets = [0, 1], sizes = [16, 16], strides = [1, 1]} : vector<16x18xf32> to vector<16x16xf32>
    %c1_44 = arith.constant 1 : index
    %123 = memref.load %arg4[%c1_44] : memref<24xf32, #tpu.memory_space<smem>>
    %124 = vector.broadcast %123 : f32 to vector<16x16xf32>
    %125 = arith.mulf %124, %122 : vector<16x16xf32>
    %126 = arith.addf %117, %125 : vector<16x16xf32>
    %c13 = arith.constant 13 : index
    %127 = memref.load %arg4[%c13] : memref<24xf32, #tpu.memory_space<smem>>
    %128 = vector.broadcast %127 : f32 to vector<16x16xf32>
    %129 = arith.mulf %128, %122 : vector<16x16xf32>
    %130 = arith.addf %121, %129 : vector<16x16xf32>
    %131 = vector.extract_strided_slice %111 {offsets = [0, 2], sizes = [16, 16], strides = [1, 1]} : vector<16x18xf32> to vector<16x16xf32>
    %c2_45 = arith.constant 2 : index
    %132 = memref.load %arg4[%c2_45] : memref<24xf32, #tpu.memory_space<smem>>
    %133 = vector.broadcast %132 : f32 to vector<16x16xf32>
    %134 = arith.mulf %133, %131 : vector<16x16xf32>
    %135 = arith.addf %126, %134 : vector<16x16xf32>
    %c14 = arith.constant 14 : index
    %136 = memref.load %arg4[%c14] : memref<24xf32, #tpu.memory_space<smem>>
    %137 = vector.broadcast %136 : f32 to vector<16x16xf32>
    %138 = arith.mulf %137, %131 : vector<16x16xf32>
    %139 = arith.addf %130, %138 : vector<16x16xf32>
    %140 = vector.extract_strided_slice %112 {offsets = [0, 0], sizes = [16, 16], strides = [1, 1]} : vector<18x16xf32> to vector<16x16xf32>
    %c0_46 = arith.constant 0 : index
    %141 = memref.load %arg5[%c0_46] : memref<24xf32, #tpu.memory_space<smem>>
    %142 = vector.broadcast %141 : f32 to vector<16x16xf32>
    %143 = arith.mulf %142, %140 : vector<16x16xf32>
    %144 = arith.addf %17, %143 : vector<16x16xf32>
    %c12_47 = arith.constant 12 : index
    %145 = memref.load %arg5[%c12_47] : memref<24xf32, #tpu.memory_space<smem>>
    %146 = vector.broadcast %145 : f32 to vector<16x16xf32>
    %147 = arith.mulf %146, %140 : vector<16x16xf32>
    %148 = arith.addf %21, %147 : vector<16x16xf32>
    %149 = vector.extract_strided_slice %112 {offsets = [1, 0], sizes = [16, 16], strides = [1, 1]} : vector<18x16xf32> to vector<16x16xf32>
    %c1_48 = arith.constant 1 : index
    %150 = memref.load %arg5[%c1_48] : memref<24xf32, #tpu.memory_space<smem>>
    %151 = vector.broadcast %150 : f32 to vector<16x16xf32>
    %152 = arith.mulf %151, %149 : vector<16x16xf32>
    %153 = arith.addf %144, %152 : vector<16x16xf32>
    %c13_49 = arith.constant 13 : index
    %154 = memref.load %arg5[%c13_49] : memref<24xf32, #tpu.memory_space<smem>>
    %155 = vector.broadcast %154 : f32 to vector<16x16xf32>
    %156 = arith.mulf %155, %149 : vector<16x16xf32>
    %157 = arith.addf %148, %156 : vector<16x16xf32>
    %158 = vector.extract_strided_slice %112 {offsets = [2, 0], sizes = [16, 16], strides = [1, 1]} : vector<18x16xf32> to vector<16x16xf32>
    %c2_50 = arith.constant 2 : index
    %159 = memref.load %arg5[%c2_50] : memref<24xf32, #tpu.memory_space<smem>>
    %160 = vector.broadcast %159 : f32 to vector<16x16xf32>
    %161 = arith.mulf %160, %158 : vector<16x16xf32>
    %162 = arith.addf %153, %161 : vector<16x16xf32>
    %c14_51 = arith.constant 14 : index
    %163 = memref.load %arg5[%c14_51] : memref<24xf32, #tpu.memory_space<smem>>
    %164 = vector.broadcast %163 : f32 to vector<16x16xf32>
    %165 = arith.mulf %164, %158 : vector<16x16xf32>
    %166 = arith.addf %157, %165 : vector<16x16xf32>
    %c0_52 = arith.constant 0 : index
    %c1_53 = arith.constant 1 : index
    %c0_54 = arith.constant 0 : index
    %c0_55 = arith.constant 0 : index
    %167 = vector.load %arg1[%c0_52, %c1_53, %c0_54, %c0_55] : memref<1x4x16x16xf32, #tpu.memory_space<vmem>>, vector<1x1x16x16xf32>
    %168 = vector.shape_cast %167 : vector<1x1x16x16xf32> to vector<16x16xf32>
    %c1_56 = arith.constant 1 : index
    %c1_57 = arith.constant 1 : index
    %169 = vector.load %arg9[%c1_56, %c1_57] : memref<18x18xf32, #tpu.memory_space<vmem>>, vector<16x16xf32>
    tpu.vector_store %arg9[%c1_56, %c1_57], %168 {strides = array<i32>} : memref<18x18xf32, #tpu.memory_space<vmem>>, vector<16x16xf32>,
    %c0_58 = arith.constant 0 : index
    %c0_59 = arith.constant 0 : index
    %170 = vector.load %arg9[%c0_58, %c0_59] : memref<18x18xf32, #tpu.memory_space<vmem>>, vector<18x18xf32>
    %cst_60 = arith.constant 0.000000e+00 : f32
    %171 = vector.broadcast %cst_60 : f32 to vector<16x16xf32>
    %cst_61 = arith.constant 0.000000e+00 : f32
    %172 = vector.broadcast %cst_61 : f32 to vector<16x16xf32>
    %173 = vector.extract_strided_slice %170 {offsets = [0, 0], sizes = [16, 16], strides = [1, 1]} : vector<18x18xf32> to vector<16x16xf32>
    %c9 = arith.constant 9 : index
    %174 = memref.load %arg2[%c9] : memref<36xf32, #tpu.memory_space<smem>>
    %175 = vector.broadcast %174 : f32 to vector<16x16xf32>
    %176 = arith.mulf %175, %173 : vector<16x16xf32>
    %177 = arith.addf %171, %176 : vector<16x16xf32>
    %c9_62 = arith.constant 9 : index
    %178 = memref.load %arg3[%c9_62] : memref<36xf32, #tpu.memory_space<smem>>
    %179 = vector.broadcast %178 : f32 to vector<16x16xf32>
    %180 = arith.mulf %179, %173 : vector<16x16xf32>
    %181 = arith.addf %172, %180 : vector<16x16xf32>
    %182 = vector.extract_strided_slice %170 {offsets = [0, 1], sizes = [16, 16], strides = [1, 1]} : vector<18x18xf32> to vector<16x16xf32>
    %c10 = arith.constant 10 : index
    %183 = memref.load %arg2[%c10] : memref<36xf32, #tpu.memory_space<smem>>
    %184 = vector.broadcast %183 : f32 to vector<16x16xf32>
    %185 = arith.mulf %184, %182 : vector<16x16xf32>
    %186 = arith.addf %177, %185 : vector<16x16xf32>
    %c10_63 = arith.constant 10 : index
    %187 = memref.load %arg3[%c10_63] : memref<36xf32, #tpu.memory_space<smem>>
    %188 = vector.broadcast %187 : f32 to vector<16x16xf32>
    %189 = arith.mulf %188, %182 : vector<16x16xf32>
    %190 = arith.addf %181, %189 : vector<16x16xf32>
    %191 = vector.extract_strided_slice %170 {offsets = [0, 2], sizes = [16, 16], strides = [1, 1]} : vector<18x18xf32> to vector<16x16xf32>
    %c11 = arith.constant 11 : index
    %192 = memref.load %arg2[%c11] : memref<36xf32, #tpu.memory_space<smem>>
    %193 = vector.broadcast %192 : f32 to vector<16x16xf32>
    %194 = arith.mulf %193, %191 : vector<16x16xf32>
    %195 = arith.addf %186, %194 : vector<16x16xf32>
    %c11_64 = arith.constant 11 : index
    %196 = memref.load %arg3[%c11_64] : memref<36xf32, #tpu.memory_space<smem>>
    %197 = vector.broadcast %196 : f32 to vector<16x16xf32>
    %198 = arith.mulf %197, %191 : vector<16x16xf32>
    %199 = arith.addf %190, %198 : vector<16x16xf32>
    %200 = vector.extract_strided_slice %170 {offsets = [1, 0], sizes = [16, 16], strides = [1, 1]} : vector<18x18xf32> to vector<16x16xf32>
    %c12_65 = arith.constant 12 : index
    %201 = memref.load %arg2[%c12_65] : memref<36xf32, #tpu.memory_space<smem>>
    %202 = vector.broadcast %201 : f32 to vector<16x16xf32>
    %203 = arith.mulf %202, %200 : vector<16x16xf32>
    %204 = arith.addf %195, %203 : vector<16x16xf32>
    %c12_66 = arith.constant 12 : index
    %205 = memref.load %arg3[%c12_66] : memref<36xf32, #tpu.memory_space<smem>>
    %206 = vector.broadcast %205 : f32 to vector<16x16xf32>
    %207 = arith.mulf %206, %200 : vector<16x16xf32>
    %208 = arith.addf %199, %207 : vector<16x16xf32>
    %209 = vector.extract_strided_slice %170 {offsets = [1, 1], sizes = [16, 16], strides = [1, 1]} : vector<18x18xf32> to vector<16x16xf32>
    %c13_67 = arith.constant 13 : index
    %210 = memref.load %arg2[%c13_67] : memref<36xf32, #tpu.memory_space<smem>>
    %211 = vector.broadcast %210 : f32 to vector<16x16xf32>
    %212 = arith.mulf %211, %209 : vector<16x16xf32>
    %213 = arith.addf %204, %212 : vector<16x16xf32>
    %c13_68 = arith.constant 13 : index
    %214 = memref.load %arg3[%c13_68] : memref<36xf32, #tpu.memory_space<smem>>
    %215 = vector.broadcast %214 : f32 to vector<16x16xf32>
    %216 = arith.mulf %215, %209 : vector<16x16xf32>
    %217 = arith.addf %208, %216 : vector<16x16xf32>
    %218 = vector.extract_strided_slice %170 {offsets = [1, 2], sizes = [16, 16], strides = [1, 1]} : vector<18x18xf32> to vector<16x16xf32>
    %c14_69 = arith.constant 14 : index
    %219 = memref.load %arg2[%c14_69] : memref<36xf32, #tpu.memory_space<smem>>
    %220 = vector.broadcast %219 : f32 to vector<16x16xf32>
    %221 = arith.mulf %220, %218 : vector<16x16xf32>
    %222 = arith.addf %213, %221 : vector<16x16xf32>
    %c14_70 = arith.constant 14 : index
    %223 = memref.load %arg3[%c14_70] : memref<36xf32, #tpu.memory_space<smem>>
    %224 = vector.broadcast %223 : f32 to vector<16x16xf32>
    %225 = arith.mulf %224, %218 : vector<16x16xf32>
    %226 = arith.addf %217, %225 : vector<16x16xf32>
    %227 = vector.extract_strided_slice %170 {offsets = [2, 0], sizes = [16, 16], strides = [1, 1]} : vector<18x18xf32> to vector<16x16xf32>
    %c15 = arith.constant 15 : index
    %228 = memref.load %arg2[%c15] : memref<36xf32, #tpu.memory_space<smem>>
    %229 = vector.broadcast %228 : f32 to vector<16x16xf32>
    %230 = arith.mulf %229, %227 : vector<16x16xf32>
    %231 = arith.addf %222, %230 : vector<16x16xf32>
    %c15_71 = arith.constant 15 : index
    %232 = memref.load %arg3[%c15_71] : memref<36xf32, #tpu.memory_space<smem>>
    %233 = vector.broadcast %232 : f32 to vector<16x16xf32>
    %234 = arith.mulf %233, %227 : vector<16x16xf32>
    %235 = arith.addf %226, %234 : vector<16x16xf32>
    %236 = vector.extract_strided_slice %170 {offsets = [2, 1], sizes = [16, 16], strides = [1, 1]} : vector<18x18xf32> to vector<16x16xf32>
    %c16 = arith.constant 16 : index
    %237 = memref.load %arg2[%c16] : memref<36xf32, #tpu.memory_space<smem>>
    %238 = vector.broadcast %237 : f32 to vector<16x16xf32>
    %239 = arith.mulf %238, %236 : vector<16x16xf32>
    %240 = arith.addf %231, %239 : vector<16x16xf32>
    %c16_72 = arith.constant 16 : index
    %241 = memref.load %arg3[%c16_72] : memref<36xf32, #tpu.memory_space<smem>>
    %242 = vector.broadcast %241 : f32 to vector<16x16xf32>
    %243 = arith.mulf %242, %236 : vector<16x16xf32>
    %244 = arith.addf %235, %243 : vector<16x16xf32>
    %245 = vector.extract_strided_slice %170 {offsets = [2, 2], sizes = [16, 16], strides = [1, 1]} : vector<18x18xf32> to vector<16x16xf32>
    %c17 = arith.constant 17 : index
    %246 = memref.load %arg2[%c17] : memref<36xf32, #tpu.memory_space<smem>>
    %247 = vector.broadcast %246 : f32 to vector<16x16xf32>
    %248 = arith.mulf %247, %245 : vector<16x16xf32>
    %249 = arith.addf %240, %248 : vector<16x16xf32>
    %c17_73 = arith.constant 17 : index
    %250 = memref.load %arg3[%c17_73] : memref<36xf32, #tpu.memory_space<smem>>
    %251 = vector.broadcast %250 : f32 to vector<16x16xf32>
    %252 = arith.mulf %251, %245 : vector<16x16xf32>
    %253 = arith.addf %244, %252 : vector<16x16xf32>
    %c0_74 = arith.constant 0 : index
    %c1_75 = arith.constant 1 : index
    %254 = vector.load %arg10[%c0_74, %c1_75] : memref<16x18xf32, #tpu.memory_space<vmem>>, vector<16x16xf32>
    tpu.vector_store %arg10[%c0_74, %c1_75], %249 {strides = array<i32>} : memref<16x18xf32, #tpu.memory_space<vmem>>, vector<16x16xf32>,
    %c1_76 = arith.constant 1 : index
    %c0_77 = arith.constant 0 : index
    %255 = vector.load %arg11[%c1_76, %c0_77] : memref<18x16xf32, #tpu.memory_space<vmem>>, vector<16x16xf32>
    tpu.vector_store %arg11[%c1_76, %c0_77], %253 {strides = array<i32>} : memref<18x16xf32, #tpu.memory_space<vmem>>, vector<16x16xf32>,
    %c0_78 = arith.constant 0 : index
    %c0_79 = arith.constant 0 : index
    %256 = vector.load %arg10[%c0_78, %c0_79] : memref<16x18xf32, #tpu.memory_space<vmem>>, vector<16x18xf32>
    %c0_80 = arith.constant 0 : index
    %c0_81 = arith.constant 0 : index
    %257 = vector.load %arg11[%c0_80, %c0_81] : memref<18x16xf32, #tpu.memory_space<vmem>>, vector<18x16xf32>
    %258 = vector.extract_strided_slice %256 {offsets = [0, 0], sizes = [16, 16], strides = [1, 1]} : vector<16x18xf32> to vector<16x16xf32>
    %c3_82 = arith.constant 3 : index
    %259 = memref.load %arg4[%c3_82] : memref<24xf32, #tpu.memory_space<smem>>
    %260 = vector.broadcast %259 : f32 to vector<16x16xf32>
    %261 = arith.mulf %260, %258 : vector<16x16xf32>
    %262 = arith.addf %135, %261 : vector<16x16xf32>
    %c15_83 = arith.constant 15 : index
    %263 = memref.load %arg4[%c15_83] : memref<24xf32, #tpu.memory_space<smem>>
    %264 = vector.broadcast %263 : f32 to vector<16x16xf32>
    %265 = arith.mulf %264, %258 : vector<16x16xf32>
    %266 = arith.addf %139, %265 : vector<16x16xf32>
    %267 = vector.extract_strided_slice %256 {offsets = [0, 1], sizes = [16, 16], strides = [1, 1]} : vector<16x18xf32> to vector<16x16xf32>
    %c4_84 = arith.constant 4 : index
    %268 = memref.load %arg4[%c4_84] : memref<24xf32, #tpu.memory_space<smem>>
    %269 = vector.broadcast %268 : f32 to vector<16x16xf32>
    %270 = arith.mulf %269, %267 : vector<16x16xf32>
    %271 = arith.addf %262, %270 : vector<16x16xf32>
    %c16_85 = arith.constant 16 : index
    %272 = memref.load %arg4[%c16_85] : memref<24xf32, #tpu.memory_space<smem>>
    %273 = vector.broadcast %272 : f32 to vector<16x16xf32>
    %274 = arith.mulf %273, %267 : vector<16x16xf32>
    %275 = arith.addf %266, %274 : vector<16x16xf32>
    %276 = vector.extract_strided_slice %256 {offsets = [0, 2], sizes = [16, 16], strides = [1, 1]} : vector<16x18xf32> to vector<16x16xf32>
    %c5_86 = arith.constant 5 : index
    %277 = memref.load %arg4[%c5_86] : memref<24xf32, #tpu.memory_space<smem>>
    %278 = vector.broadcast %277 : f32 to vector<16x16xf32>
    %279 = arith.mulf %278, %276 : vector<16x16xf32>
    %280 = arith.addf %271, %279 : vector<16x16xf32>
    %c17_87 = arith.constant 17 : index
    %281 = memref.load %arg4[%c17_87] : memref<24xf32, #tpu.memory_space<smem>>
    %282 = vector.broadcast %281 : f32 to vector<16x16xf32>
    %283 = arith.mulf %282, %276 : vector<16x16xf32>
    %284 = arith.addf %275, %283 : vector<16x16xf32>
    %285 = vector.extract_strided_slice %257 {offsets = [0, 0], sizes = [16, 16], strides = [1, 1]} : vector<18x16xf32> to vector<16x16xf32>
    %c3_88 = arith.constant 3 : index
    %286 = memref.load %arg5[%c3_88] : memref<24xf32, #tpu.memory_space<smem>>
    %287 = vector.broadcast %286 : f32 to vector<16x16xf32>
    %288 = arith.mulf %287, %285 : vector<16x16xf32>
    %289 = arith.addf %162, %288 : vector<16x16xf32>
    %c15_89 = arith.constant 15 : index
    %290 = memref.load %arg5[%c15_89] : memref<24xf32, #tpu.memory_space<smem>>
    %291 = vector.broadcast %290 : f32 to vector<16x16xf32>
    %292 = arith.mulf %291, %285 : vector<16x16xf32>
    %293 = arith.addf %166, %292 : vector<16x16xf32>
    %294 = vector.extract_strided_slice %257 {offsets = [1, 0], sizes = [16, 16], strides = [1, 1]} : vector<18x16xf32> to vector<16x16xf32>
    %c4_90 = arith.constant 4 : index
    %295 = memref.load %arg5[%c4_90] : memref<24xf32, #tpu.memory_space<smem>>
    %296 = vector.broadcast %295 : f32 to vector<16x16xf32>
    %297 = arith.mulf %296, %294 : vector<16x16xf32>
    %298 = arith.addf %289, %297 : vector<16x16xf32>
    %c16_91 = arith.constant 16 : index
    %299 = memref.load %arg5[%c16_91] : memref<24xf32, #tpu.memory_space<smem>>
    %300 = vector.broadcast %299 : f32 to vector<16x16xf32>
    %301 = arith.mulf %300, %294 : vector<16x16xf32>
    %302 = arith.addf %293, %301 : vector<16x16xf32>
    %303 = vector.extract_strided_slice %257 {offsets = [2, 0], sizes = [16, 16], strides = [1, 1]} : vector<18x16xf32> to vector<16x16xf32>
    %c5_92 = arith.constant 5 : index
    %304 = memref.load %arg5[%c5_92] : memref<24xf32, #tpu.memory_space<smem>>
    %305 = vector.broadcast %304 : f32 to vector<16x16xf32>
    %306 = arith.mulf %305, %303 : vector<16x16xf32>
    %307 = arith.addf %298, %306 : vector<16x16xf32>
    %c17_93 = arith.constant 17 : index
    %308 = memref.load %arg5[%c17_93] : memref<24xf32, #tpu.memory_space<smem>>
    %309 = vector.broadcast %308 : f32 to vector<16x16xf32>
    %310 = arith.mulf %309, %303 : vector<16x16xf32>
    %311 = arith.addf %302, %310 : vector<16x16xf32>
    %c0_94 = arith.constant 0 : index
    %c2_95 = arith.constant 2 : index
    %c0_96 = arith.constant 0 : index
    %c0_97 = arith.constant 0 : index
    %312 = vector.load %arg1[%c0_94, %c2_95, %c0_96, %c0_97] : memref<1x4x16x16xf32, #tpu.memory_space<vmem>>, vector<1x1x16x16xf32>
    %313 = vector.shape_cast %312 : vector<1x1x16x16xf32> to vector<16x16xf32>
    %c1_98 = arith.constant 1 : index
    %c1_99 = arith.constant 1 : index
    %314 = vector.load %arg9[%c1_98, %c1_99] : memref<18x18xf32, #tpu.memory_space<vmem>>, vector<16x16xf32>
    tpu.vector_store %arg9[%c1_98, %c1_99], %313 {strides = array<i32>} : memref<18x18xf32, #tpu.memory_space<vmem>>, vector<16x16xf32>,
    %c0_100 = arith.constant 0 : index
    %c0_101 = arith.constant 0 : index
    %315 = vector.load %arg9[%c0_100, %c0_101] : memref<18x18xf32, #tpu.memory_space<vmem>>, vector<18x18xf32>
    %cst_102 = arith.constant 0.000000e+00 : f32
    %316 = vector.broadcast %cst_102 : f32 to vector<16x16xf32>
    %cst_103 = arith.constant 0.000000e+00 : f32
    %317 = vector.broadcast %cst_103 : f32 to vector<16x16xf32>
    %318 = vector.extract_strided_slice %315 {offsets = [0, 0], sizes = [16, 16], strides = [1, 1]} : vector<18x18xf32> to vector<16x16xf32>
    %c18 = arith.constant 18 : index
    %319 = memref.load %arg2[%c18] : memref<36xf32, #tpu.memory_space<smem>>
    %320 = vector.broadcast %319 : f32 to vector<16x16xf32>
    %321 = arith.mulf %320, %318 : vector<16x16xf32>
    %322 = arith.addf %316, %321 : vector<16x16xf32>
    %c18_104 = arith.constant 18 : index
    %323 = memref.load %arg3[%c18_104] : memref<36xf32, #tpu.memory_space<smem>>
    %324 = vector.broadcast %323 : f32 to vector<16x16xf32>
    %325 = arith.mulf %324, %318 : vector<16x16xf32>
    %326 = arith.addf %317, %325 : vector<16x16xf32>
    %327 = vector.extract_strided_slice %315 {offsets = [0, 1], sizes = [16, 16], strides = [1, 1]} : vector<18x18xf32> to vector<16x16xf32>
    %c19 = arith.constant 19 : index
    %328 = memref.load %arg2[%c19] : memref<36xf32, #tpu.memory_space<smem>>
    %329 = vector.broadcast %328 : f32 to vector<16x16xf32>
    %330 = arith.mulf %329, %327 : vector<16x16xf32>
    %331 = arith.addf %322, %330 : vector<16x16xf32>
    %c19_105 = arith.constant 19 : index
    %332 = memref.load %arg3[%c19_105] : memref<36xf32, #tpu.memory_space<smem>>
    %333 = vector.broadcast %332 : f32 to vector<16x16xf32>
    %334 = arith.mulf %333, %327 : vector<16x16xf32>
    %335 = arith.addf %326, %334 : vector<16x16xf32>
    %336 = vector.extract_strided_slice %315 {offsets = [0, 2], sizes = [16, 16], strides = [1, 1]} : vector<18x18xf32> to vector<16x16xf32>
    %c20 = arith.constant 20 : index
    %337 = memref.load %arg2[%c20] : memref<36xf32, #tpu.memory_space<smem>>
    %338 = vector.broadcast %337 : f32 to vector<16x16xf32>
    %339 = arith.mulf %338, %336 : vector<16x16xf32>
    %340 = arith.addf %331, %339 : vector<16x16xf32>
    %c20_106 = arith.constant 20 : index
    %341 = memref.load %arg3[%c20_106] : memref<36xf32, #tpu.memory_space<smem>>
    %342 = vector.broadcast %341 : f32 to vector<16x16xf32>
    %343 = arith.mulf %342, %336 : vector<16x16xf32>
    %344 = arith.addf %335, %343 : vector<16x16xf32>
    %345 = vector.extract_strided_slice %315 {offsets = [1, 0], sizes = [16, 16], strides = [1, 1]} : vector<18x18xf32> to vector<16x16xf32>
    %c21 = arith.constant 21 : index
    %346 = memref.load %arg2[%c21] : memref<36xf32, #tpu.memory_space<smem>>
    %347 = vector.broadcast %346 : f32 to vector<16x16xf32>
    %348 = arith.mulf %347, %345 : vector<16x16xf32>
    %349 = arith.addf %340, %348 : vector<16x16xf32>
    %c21_107 = arith.constant 21 : index
    %350 = memref.load %arg3[%c21_107] : memref<36xf32, #tpu.memory_space<smem>>
    %351 = vector.broadcast %350 : f32 to vector<16x16xf32>
    %352 = arith.mulf %351, %345 : vector<16x16xf32>
    %353 = arith.addf %344, %352 : vector<16x16xf32>
    %354 = vector.extract_strided_slice %315 {offsets = [1, 1], sizes = [16, 16], strides = [1, 1]} : vector<18x18xf32> to vector<16x16xf32>
    %c22 = arith.constant 22 : index
    %355 = memref.load %arg2[%c22] : memref<36xf32, #tpu.memory_space<smem>>
    %356 = vector.broadcast %355 : f32 to vector<16x16xf32>
    %357 = arith.mulf %356, %354 : vector<16x16xf32>
    %358 = arith.addf %349, %357 : vector<16x16xf32>
    %c22_108 = arith.constant 22 : index
    %359 = memref.load %arg3[%c22_108] : memref<36xf32, #tpu.memory_space<smem>>
    %360 = vector.broadcast %359 : f32 to vector<16x16xf32>
    %361 = arith.mulf %360, %354 : vector<16x16xf32>
    %362 = arith.addf %353, %361 : vector<16x16xf32>
    %363 = vector.extract_strided_slice %315 {offsets = [1, 2], sizes = [16, 16], strides = [1, 1]} : vector<18x18xf32> to vector<16x16xf32>
    %c23 = arith.constant 23 : index
    %364 = memref.load %arg2[%c23] : memref<36xf32, #tpu.memory_space<smem>>
    %365 = vector.broadcast %364 : f32 to vector<16x16xf32>
    %366 = arith.mulf %365, %363 : vector<16x16xf32>
    %367 = arith.addf %358, %366 : vector<16x16xf32>
    %c23_109 = arith.constant 23 : index
    %368 = memref.load %arg3[%c23_109] : memref<36xf32, #tpu.memory_space<smem>>
    %369 = vector.broadcast %368 : f32 to vector<16x16xf32>
    %370 = arith.mulf %369, %363 : vector<16x16xf32>
    %371 = arith.addf %362, %370 : vector<16x16xf32>
    %372 = vector.extract_strided_slice %315 {offsets = [2, 0], sizes = [16, 16], strides = [1, 1]} : vector<18x18xf32> to vector<16x16xf32>
    %c24 = arith.constant 24 : index
    %373 = memref.load %arg2[%c24] : memref<36xf32, #tpu.memory_space<smem>>
    %374 = vector.broadcast %373 : f32 to vector<16x16xf32>
    %375 = arith.mulf %374, %372 : vector<16x16xf32>
    %376 = arith.addf %367, %375 : vector<16x16xf32>
    %c24_110 = arith.constant 24 : index
    %377 = memref.load %arg3[%c24_110] : memref<36xf32, #tpu.memory_space<smem>>
    %378 = vector.broadcast %377 : f32 to vector<16x16xf32>
    %379 = arith.mulf %378, %372 : vector<16x16xf32>
    %380 = arith.addf %371, %379 : vector<16x16xf32>
    %381 = vector.extract_strided_slice %315 {offsets = [2, 1], sizes = [16, 16], strides = [1, 1]} : vector<18x18xf32> to vector<16x16xf32>
    %c25 = arith.constant 25 : index
    %382 = memref.load %arg2[%c25] : memref<36xf32, #tpu.memory_space<smem>>
    %383 = vector.broadcast %382 : f32 to vector<16x16xf32>
    %384 = arith.mulf %383, %381 : vector<16x16xf32>
    %385 = arith.addf %376, %384 : vector<16x16xf32>
    %c25_111 = arith.constant 25 : index
    %386 = memref.load %arg3[%c25_111] : memref<36xf32, #tpu.memory_space<smem>>
    %387 = vector.broadcast %386 : f32 to vector<16x16xf32>
    %388 = arith.mulf %387, %381 : vector<16x16xf32>
    %389 = arith.addf %380, %388 : vector<16x16xf32>
    %390 = vector.extract_strided_slice %315 {offsets = [2, 2], sizes = [16, 16], strides = [1, 1]} : vector<18x18xf32> to vector<16x16xf32>
    %c26 = arith.constant 26 : index
    %391 = memref.load %arg2[%c26] : memref<36xf32, #tpu.memory_space<smem>>
    %392 = vector.broadcast %391 : f32 to vector<16x16xf32>
    %393 = arith.mulf %392, %390 : vector<16x16xf32>
    %394 = arith.addf %385, %393 : vector<16x16xf32>
    %c26_112 = arith.constant 26 : index
    %395 = memref.load %arg3[%c26_112] : memref<36xf32, #tpu.memory_space<smem>>
    %396 = vector.broadcast %395 : f32 to vector<16x16xf32>
    %397 = arith.mulf %396, %390 : vector<16x16xf32>
    %398 = arith.addf %389, %397 : vector<16x16xf32>
    %c0_113 = arith.constant 0 : index
    %c1_114 = arith.constant 1 : index
    %399 = vector.load %arg10[%c0_113, %c1_114] : memref<16x18xf32, #tpu.memory_space<vmem>>, vector<16x16xf32>
    tpu.vector_store %arg10[%c0_113, %c1_114], %394 {strides = array<i32>} : memref<16x18xf32, #tpu.memory_space<vmem>>, vector<16x16xf32>,
    %c1_115 = arith.constant 1 : index
    %c0_116 = arith.constant 0 : index
    %400 = vector.load %arg11[%c1_115, %c0_116] : memref<18x16xf32, #tpu.memory_space<vmem>>, vector<16x16xf32>
    tpu.vector_store %arg11[%c1_115, %c0_116], %398 {strides = array<i32>} : memref<18x16xf32, #tpu.memory_space<vmem>>, vector<16x16xf32>,
    %c0_117 = arith.constant 0 : index
    %c0_118 = arith.constant 0 : index
    %401 = vector.load %arg10[%c0_117, %c0_118] : memref<16x18xf32, #tpu.memory_space<vmem>>, vector<16x18xf32>
    %c0_119 = arith.constant 0 : index
    %c0_120 = arith.constant 0 : index
    %402 = vector.load %arg11[%c0_119, %c0_120] : memref<18x16xf32, #tpu.memory_space<vmem>>, vector<18x16xf32>
    %403 = vector.extract_strided_slice %401 {offsets = [0, 0], sizes = [16, 16], strides = [1, 1]} : vector<16x18xf32> to vector<16x16xf32>
    %c6_121 = arith.constant 6 : index
    %404 = memref.load %arg4[%c6_121] : memref<24xf32, #tpu.memory_space<smem>>
    %405 = vector.broadcast %404 : f32 to vector<16x16xf32>
    %406 = arith.mulf %405, %403 : vector<16x16xf32>
    %407 = arith.addf %280, %406 : vector<16x16xf32>
    %c18_122 = arith.constant 18 : index
    %408 = memref.load %arg4[%c18_122] : memref<24xf32, #tpu.memory_space<smem>>
    %409 = vector.broadcast %408 : f32 to vector<16x16xf32>
    %410 = arith.mulf %409, %403 : vector<16x16xf32>
    %411 = arith.addf %284, %410 : vector<16x16xf32>
    %412 = vector.extract_strided_slice %401 {offsets = [0, 1], sizes = [16, 16], strides = [1, 1]} : vector<16x18xf32> to vector<16x16xf32>
    %c7_123 = arith.constant 7 : index
    %413 = memref.load %arg4[%c7_123] : memref<24xf32, #tpu.memory_space<smem>>
    %414 = vector.broadcast %413 : f32 to vector<16x16xf32>
    %415 = arith.mulf %414, %412 : vector<16x16xf32>
    %416 = arith.addf %407, %415 : vector<16x16xf32>
    %c19_124 = arith.constant 19 : index
    %417 = memref.load %arg4[%c19_124] : memref<24xf32, #tpu.memory_space<smem>>
    %418 = vector.broadcast %417 : f32 to vector<16x16xf32>
    %419 = arith.mulf %418, %412 : vector<16x16xf32>
    %420 = arith.addf %411, %419 : vector<16x16xf32>
    %421 = vector.extract_strided_slice %401 {offsets = [0, 2], sizes = [16, 16], strides = [1, 1]} : vector<16x18xf32> to vector<16x16xf32>
    %c8_125 = arith.constant 8 : index
    %422 = memref.load %arg4[%c8_125] : memref<24xf32, #tpu.memory_space<smem>>
    %423 = vector.broadcast %422 : f32 to vector<16x16xf32>
    %424 = arith.mulf %423, %421 : vector<16x16xf32>
    %425 = arith.addf %416, %424 : vector<16x16xf32>
    %c20_126 = arith.constant 20 : index
    %426 = memref.load %arg4[%c20_126] : memref<24xf32, #tpu.memory_space<smem>>
    %427 = vector.broadcast %426 : f32 to vector<16x16xf32>
    %428 = arith.mulf %427, %421 : vector<16x16xf32>
    %429 = arith.addf %420, %428 : vector<16x16xf32>
    %430 = vector.extract_strided_slice %402 {offsets = [0, 0], sizes = [16, 16], strides = [1, 1]} : vector<18x16xf32> to vector<16x16xf32>
    %c6_127 = arith.constant 6 : index
    %431 = memref.load %arg5[%c6_127] : memref<24xf32, #tpu.memory_space<smem>>
    %432 = vector.broadcast %431 : f32 to vector<16x16xf32>
    %433 = arith.mulf %432, %430 : vector<16x16xf32>
    %434 = arith.addf %307, %433 : vector<16x16xf32>
    %c18_128 = arith.constant 18 : index
    %435 = memref.load %arg5[%c18_128] : memref<24xf32, #tpu.memory_space<smem>>
    %436 = vector.broadcast %435 : f32 to vector<16x16xf32>
    %437 = arith.mulf %436, %430 : vector<16x16xf32>
    %438 = arith.addf %311, %437 : vector<16x16xf32>
    %439 = vector.extract_strided_slice %402 {offsets = [1, 0], sizes = [16, 16], strides = [1, 1]} : vector<18x16xf32> to vector<16x16xf32>
    %c7_129 = arith.constant 7 : index
    %440 = memref.load %arg5[%c7_129] : memref<24xf32, #tpu.memory_space<smem>>
    %441 = vector.broadcast %440 : f32 to vector<16x16xf32>
    %442 = arith.mulf %441, %439 : vector<16x16xf32>
    %443 = arith.addf %434, %442 : vector<16x16xf32>
    %c19_130 = arith.constant 19 : index
    %444 = memref.load %arg5[%c19_130] : memref<24xf32, #tpu.memory_space<smem>>
    %445 = vector.broadcast %444 : f32 to vector<16x16xf32>
    %446 = arith.mulf %445, %439 : vector<16x16xf32>
    %447 = arith.addf %438, %446 : vector<16x16xf32>
    %448 = vector.extract_strided_slice %402 {offsets = [2, 0], sizes = [16, 16], strides = [1, 1]} : vector<18x16xf32> to vector<16x16xf32>
    %c8_131 = arith.constant 8 : index
    %449 = memref.load %arg5[%c8_131] : memref<24xf32, #tpu.memory_space<smem>>
    %450 = vector.broadcast %449 : f32 to vector<16x16xf32>
    %451 = arith.mulf %450, %448 : vector<16x16xf32>
    %452 = arith.addf %443, %451 : vector<16x16xf32>
    %c20_132 = arith.constant 20 : index
    %453 = memref.load %arg5[%c20_132] : memref<24xf32, #tpu.memory_space<smem>>
    %454 = vector.broadcast %453 : f32 to vector<16x16xf32>
    %455 = arith.mulf %454, %448 : vector<16x16xf32>
    %456 = arith.addf %447, %455 : vector<16x16xf32>
    %c0_133 = arith.constant 0 : index
    %c3_134 = arith.constant 3 : index
    %c0_135 = arith.constant 0 : index
    %c0_136 = arith.constant 0 : index
    %457 = vector.load %arg1[%c0_133, %c3_134, %c0_135, %c0_136] : memref<1x4x16x16xf32, #tpu.memory_space<vmem>>, vector<1x1x16x16xf32>
    %458 = vector.shape_cast %457 : vector<1x1x16x16xf32> to vector<16x16xf32>
    %c1_137 = arith.constant 1 : index
    %c1_138 = arith.constant 1 : index
    %459 = vector.load %arg9[%c1_137, %c1_138] : memref<18x18xf32, #tpu.memory_space<vmem>>, vector<16x16xf32>
    tpu.vector_store %arg9[%c1_137, %c1_138], %458 {strides = array<i32>} : memref<18x18xf32, #tpu.memory_space<vmem>>, vector<16x16xf32>,
    %c0_139 = arith.constant 0 : index
    %c0_140 = arith.constant 0 : index
    %460 = vector.load %arg9[%c0_139, %c0_140] : memref<18x18xf32, #tpu.memory_space<vmem>>, vector<18x18xf32>
    %cst_141 = arith.constant 0.000000e+00 : f32
    %461 = vector.broadcast %cst_141 : f32 to vector<16x16xf32>
    %cst_142 = arith.constant 0.000000e+00 : f32
    %462 = vector.broadcast %cst_142 : f32 to vector<16x16xf32>
    %463 = vector.extract_strided_slice %460 {offsets = [0, 0], sizes = [16, 16], strides = [1, 1]} : vector<18x18xf32> to vector<16x16xf32>
    %c27 = arith.constant 27 : index
    %464 = memref.load %arg2[%c27] : memref<36xf32, #tpu.memory_space<smem>>
    %465 = vector.broadcast %464 : f32 to vector<16x16xf32>
    %466 = arith.mulf %465, %463 : vector<16x16xf32>
    %467 = arith.addf %461, %466 : vector<16x16xf32>
    %c27_143 = arith.constant 27 : index
    %468 = memref.load %arg3[%c27_143] : memref<36xf32, #tpu.memory_space<smem>>
    %469 = vector.broadcast %468 : f32 to vector<16x16xf32>
    %470 = arith.mulf %469, %463 : vector<16x16xf32>
    %471 = arith.addf %462, %470 : vector<16x16xf32>
    %472 = vector.extract_strided_slice %460 {offsets = [0, 1], sizes = [16, 16], strides = [1, 1]} : vector<18x18xf32> to vector<16x16xf32>
    %c28 = arith.constant 28 : index
    %473 = memref.load %arg2[%c28] : memref<36xf32, #tpu.memory_space<smem>>
    %474 = vector.broadcast %473 : f32 to vector<16x16xf32>
    %475 = arith.mulf %474, %472 : vector<16x16xf32>
    %476 = arith.addf %467, %475 : vector<16x16xf32>
    %c28_144 = arith.constant 28 : index
    %477 = memref.load %arg3[%c28_144] : memref<36xf32, #tpu.memory_space<smem>>
    %478 = vector.broadcast %477 : f32 to vector<16x16xf32>
    %479 = arith.mulf %478, %472 : vector<16x16xf32>
    %480 = arith.addf %471, %479 : vector<16x16xf32>
    %481 = vector.extract_strided_slice %460 {offsets = [0, 2], sizes = [16, 16], strides = [1, 1]} : vector<18x18xf32> to vector<16x16xf32>
    %c29 = arith.constant 29 : index
    %482 = memref.load %arg2[%c29] : memref<36xf32, #tpu.memory_space<smem>>
    %483 = vector.broadcast %482 : f32 to vector<16x16xf32>
    %484 = arith.mulf %483, %481 : vector<16x16xf32>
    %485 = arith.addf %476, %484 : vector<16x16xf32>
    %c29_145 = arith.constant 29 : index
    %486 = memref.load %arg3[%c29_145] : memref<36xf32, #tpu.memory_space<smem>>
    %487 = vector.broadcast %486 : f32 to vector<16x16xf32>
    %488 = arith.mulf %487, %481 : vector<16x16xf32>
    %489 = arith.addf %480, %488 : vector<16x16xf32>
    %490 = vector.extract_strided_slice %460 {offsets = [1, 0], sizes = [16, 16], strides = [1, 1]} : vector<18x18xf32> to vector<16x16xf32>
    %c30 = arith.constant 30 : index
    %491 = memref.load %arg2[%c30] : memref<36xf32, #tpu.memory_space<smem>>
    %492 = vector.broadcast %491 : f32 to vector<16x16xf32>
    %493 = arith.mulf %492, %490 : vector<16x16xf32>
    %494 = arith.addf %485, %493 : vector<16x16xf32>
    %c30_146 = arith.constant 30 : index
    %495 = memref.load %arg3[%c30_146] : memref<36xf32, #tpu.memory_space<smem>>
    %496 = vector.broadcast %495 : f32 to vector<16x16xf32>
    %497 = arith.mulf %496, %490 : vector<16x16xf32>
    %498 = arith.addf %489, %497 : vector<16x16xf32>
    %499 = vector.extract_strided_slice %460 {offsets = [1, 1], sizes = [16, 16], strides = [1, 1]} : vector<18x18xf32> to vector<16x16xf32>
    %c31 = arith.constant 31 : index
    %500 = memref.load %arg2[%c31] : memref<36xf32, #tpu.memory_space<smem>>
    %501 = vector.broadcast %500 : f32 to vector<16x16xf32>
    %502 = arith.mulf %501, %499 : vector<16x16xf32>
    %503 = arith.addf %494, %502 : vector<16x16xf32>
    %c31_147 = arith.constant 31 : index
    %504 = memref.load %arg3[%c31_147] : memref<36xf32, #tpu.memory_space<smem>>
    %505 = vector.broadcast %504 : f32 to vector<16x16xf32>
    %506 = arith.mulf %505, %499 : vector<16x16xf32>
    %507 = arith.addf %498, %506 : vector<16x16xf32>
    %508 = vector.extract_strided_slice %460 {offsets = [1, 2], sizes = [16, 16], strides = [1, 1]} : vector<18x18xf32> to vector<16x16xf32>
    %c32 = arith.constant 32 : index
    %509 = memref.load %arg2[%c32] : memref<36xf32, #tpu.memory_space<smem>>
    %510 = vector.broadcast %509 : f32 to vector<16x16xf32>
    %511 = arith.mulf %510, %508 : vector<16x16xf32>
    %512 = arith.addf %503, %511 : vector<16x16xf32>
    %c32_148 = arith.constant 32 : index
    %513 = memref.load %arg3[%c32_148] : memref<36xf32, #tpu.memory_space<smem>>
    %514 = vector.broadcast %513 : f32 to vector<16x16xf32>
    %515 = arith.mulf %514, %508 : vector<16x16xf32>
    %516 = arith.addf %507, %515 : vector<16x16xf32>
    %517 = vector.extract_strided_slice %460 {offsets = [2, 0], sizes = [16, 16], strides = [1, 1]} : vector<18x18xf32> to vector<16x16xf32>
    %c33 = arith.constant 33 : index
    %518 = memref.load %arg2[%c33] : memref<36xf32, #tpu.memory_space<smem>>
    %519 = vector.broadcast %518 : f32 to vector<16x16xf32>
    %520 = arith.mulf %519, %517 : vector<16x16xf32>
    %521 = arith.addf %512, %520 : vector<16x16xf32>
    %c33_149 = arith.constant 33 : index
    %522 = memref.load %arg3[%c33_149] : memref<36xf32, #tpu.memory_space<smem>>
    %523 = vector.broadcast %522 : f32 to vector<16x16xf32>
    %524 = arith.mulf %523, %517 : vector<16x16xf32>
    %525 = arith.addf %516, %524 : vector<16x16xf32>
    %526 = vector.extract_strided_slice %460 {offsets = [2, 1], sizes = [16, 16], strides = [1, 1]} : vector<18x18xf32> to vector<16x16xf32>
    %c34 = arith.constant 34 : index
    %527 = memref.load %arg2[%c34] : memref<36xf32, #tpu.memory_space<smem>>
    %528 = vector.broadcast %527 : f32 to vector<16x16xf32>
    %529 = arith.mulf %528, %526 : vector<16x16xf32>
    %530 = arith.addf %521, %529 : vector<16x16xf32>
    %c34_150 = arith.constant 34 : index
    %531 = memref.load %arg3[%c34_150] : memref<36xf32, #tpu.memory_space<smem>>
    %532 = vector.broadcast %531 : f32 to vector<16x16xf32>
    %533 = arith.mulf %532, %526 : vector<16x16xf32>
    %534 = arith.addf %525, %533 : vector<16x16xf32>
    %535 = vector.extract_strided_slice %460 {offsets = [2, 2], sizes = [16, 16], strides = [1, 1]} : vector<18x18xf32> to vector<16x16xf32>
    %c35 = arith.constant 35 : index
    %536 = memref.load %arg2[%c35] : memref<36xf32, #tpu.memory_space<smem>>
    %537 = vector.broadcast %536 : f32 to vector<16x16xf32>
    %538 = arith.mulf %537, %535 : vector<16x16xf32>
    %539 = arith.addf %530, %538 : vector<16x16xf32>
    %c35_151 = arith.constant 35 : index
    %540 = memref.load %arg3[%c35_151] : memref<36xf32, #tpu.memory_space<smem>>
    %541 = vector.broadcast %540 : f32 to vector<16x16xf32>
    %542 = arith.mulf %541, %535 : vector<16x16xf32>
    %543 = arith.addf %534, %542 : vector<16x16xf32>
    %c0_152 = arith.constant 0 : index
    %c1_153 = arith.constant 1 : index
    %544 = vector.load %arg10[%c0_152, %c1_153] : memref<16x18xf32, #tpu.memory_space<vmem>>, vector<16x16xf32>
    tpu.vector_store %arg10[%c0_152, %c1_153], %539 {strides = array<i32>} : memref<16x18xf32, #tpu.memory_space<vmem>>, vector<16x16xf32>,
    %c1_154 = arith.constant 1 : index
    %c0_155 = arith.constant 0 : index
    %545 = vector.load %arg11[%c1_154, %c0_155] : memref<18x16xf32, #tpu.memory_space<vmem>>, vector<16x16xf32>
    tpu.vector_store %arg11[%c1_154, %c0_155], %543 {strides = array<i32>} : memref<18x16xf32, #tpu.memory_space<vmem>>, vector<16x16xf32>,
    %c0_156 = arith.constant 0 : index
    %c0_157 = arith.constant 0 : index
    %546 = vector.load %arg10[%c0_156, %c0_157] : memref<16x18xf32, #tpu.memory_space<vmem>>, vector<16x18xf32>
    %c0_158 = arith.constant 0 : index
    %c0_159 = arith.constant 0 : index
    %547 = vector.load %arg11[%c0_158, %c0_159] : memref<18x16xf32, #tpu.memory_space<vmem>>, vector<18x16xf32>
    %548 = vector.extract_strided_slice %546 {offsets = [0, 0], sizes = [16, 16], strides = [1, 1]} : vector<16x18xf32> to vector<16x16xf32>
    %c9_160 = arith.constant 9 : index
    %549 = memref.load %arg4[%c9_160] : memref<24xf32, #tpu.memory_space<smem>>
    %550 = vector.broadcast %549 : f32 to vector<16x16xf32>
    %551 = arith.mulf %550, %548 : vector<16x16xf32>
    %552 = arith.addf %425, %551 : vector<16x16xf32>
    %c21_161 = arith.constant 21 : index
    %553 = memref.load %arg4[%c21_161] : memref<24xf32, #tpu.memory_space<smem>>
    %554 = vector.broadcast %553 : f32 to vector<16x16xf32>
    %555 = arith.mulf %554, %548 : vector<16x16xf32>
    %556 = arith.addf %429, %555 : vector<16x16xf32>
    %557 = vector.extract_strided_slice %546 {offsets = [0, 1], sizes = [16, 16], strides = [1, 1]} : vector<16x18xf32> to vector<16x16xf32>
    %c10_162 = arith.constant 10 : index
    %558 = memref.load %arg4[%c10_162] : memref<24xf32, #tpu.memory_space<smem>>
    %559 = vector.broadcast %558 : f32 to vector<16x16xf32>
    %560 = arith.mulf %559, %557 : vector<16x16xf32>
    %561 = arith.addf %552, %560 : vector<16x16xf32>
    %c22_163 = arith.constant 22 : index
    %562 = memref.load %arg4[%c22_163] : memref<24xf32, #tpu.memory_space<smem>>
    %563 = vector.broadcast %562 : f32 to vector<16x16xf32>
    %564 = arith.mulf %563, %557 : vector<16x16xf32>
    %565 = arith.addf %556, %564 : vector<16x16xf32>
    %566 = vector.extract_strided_slice %546 {offsets = [0, 2], sizes = [16, 16], strides = [1, 1]} : vector<16x18xf32> to vector<16x16xf32>
    %c11_164 = arith.constant 11 : index
    %567 = memref.load %arg4[%c11_164] : memref<24xf32, #tpu.memory_space<smem>>
    %568 = vector.broadcast %567 : f32 to vector<16x16xf32>
    %569 = arith.mulf %568, %566 : vector<16x16xf32>
    %570 = arith.addf %561, %569 : vector<16x16xf32>
    %c23_165 = arith.constant 23 : index
    %571 = memref.load %arg4[%c23_165] : memref<24xf32, #tpu.memory_space<smem>>
    %572 = vector.broadcast %571 : f32 to vector<16x16xf32>
    %573 = arith.mulf %572, %566 : vector<16x16xf32>
    %574 = arith.addf %565, %573 : vector<16x16xf32>
    %575 = vector.extract_strided_slice %547 {offsets = [0, 0], sizes = [16, 16], strides = [1, 1]} : vector<18x16xf32> to vector<16x16xf32>
    %c9_166 = arith.constant 9 : index
    %576 = memref.load %arg5[%c9_166] : memref<24xf32, #tpu.memory_space<smem>>
    %577 = vector.broadcast %576 : f32 to vector<16x16xf32>
    %578 = arith.mulf %577, %575 : vector<16x16xf32>
    %579 = arith.addf %452, %578 : vector<16x16xf32>
    %c21_167 = arith.constant 21 : index
    %580 = memref.load %arg5[%c21_167] : memref<24xf32, #tpu.memory_space<smem>>
    %581 = vector.broadcast %580 : f32 to vector<16x16xf32>
    %582 = arith.mulf %581, %575 : vector<16x16xf32>
    %583 = arith.addf %456, %582 : vector<16x16xf32>
    %584 = vector.extract_strided_slice %547 {offsets = [1, 0], sizes = [16, 16], strides = [1, 1]} : vector<18x16xf32> to vector<16x16xf32>
    %c10_168 = arith.constant 10 : index
    %585 = memref.load %arg5[%c10_168] : memref<24xf32, #tpu.memory_space<smem>>
    %586 = vector.broadcast %585 : f32 to vector<16x16xf32>
    %587 = arith.mulf %586, %584 : vector<16x16xf32>
    %588 = arith.addf %579, %587 : vector<16x16xf32>
    %c22_169 = arith.constant 22 : index
    %589 = memref.load %arg5[%c22_169] : memref<24xf32, #tpu.memory_space<smem>>
    %590 = vector.broadcast %589 : f32 to vector<16x16xf32>
    %591 = arith.mulf %590, %584 : vector<16x16xf32>
    %592 = arith.addf %583, %591 : vector<16x16xf32>
    %593 = vector.extract_strided_slice %547 {offsets = [2, 0], sizes = [16, 16], strides = [1, 1]} : vector<18x16xf32> to vector<16x16xf32>
    %c11_170 = arith.constant 11 : index
    %594 = memref.load %arg5[%c11_170] : memref<24xf32, #tpu.memory_space<smem>>
    %595 = vector.broadcast %594 : f32 to vector<16x16xf32>
    %596 = arith.mulf %595, %593 : vector<16x16xf32>
    %597 = arith.addf %588, %596 : vector<16x16xf32>
    %c23_171 = arith.constant 23 : index
    %598 = memref.load %arg5[%c23_171] : memref<24xf32, #tpu.memory_space<smem>>
    %599 = vector.broadcast %598 : f32 to vector<16x16xf32>
    %600 = arith.mulf %599, %593 : vector<16x16xf32>
    %601 = arith.addf %592, %600 : vector<16x16xf32>
    %602 = vector.shape_cast %570 : vector<16x16xf32> to vector<1x16x16xf32>
    %603 = vector.shape_cast %597 : vector<16x16xf32> to vector<1x16x16xf32>
    %604 = vector.shape_cast %574 : vector<16x16xf32> to vector<1x16x16xf32>
    %605 = vector.shape_cast %601 : vector<16x16xf32> to vector<1x16x16xf32>
    %606 = tpu.concatenate %602, %603, %604, %605 in 0 : vector<1x16x16xf32>, vector<1x16x16xf32>, vector<1x16x16xf32>, vector<1x16x16xf32> -> vector<4x16x16xf32>
    %c0_172 = arith.constant 0 : index
    %c0_173 = arith.constant 0 : index
    %c0_174 = arith.constant 0 : index
    %c0_175 = arith.constant 0 : index
    %607 = vector.load %arg8[%c0_172, %c0_173, %c0_174, %c0_175] : memref<1x4x16x16xf32, #tpu.memory_space<vmem>>, vector<1x4x16x16xf32>
    %608 = vector.shape_cast %607 : vector<1x4x16x16xf32> to vector<4x16x16xf32>
    %609 = vector.shape_cast %606 : vector<4x16x16xf32> to vector<1x4x16x16xf32>
    tpu.vector_store %arg8[%c0_172, %c0_173, %c0_174, %c0_175], %609 {strides = array<i32>} : memref<1x4x16x16xf32, #tpu.memory_space<vmem>>, vector<1x4x16x16xf32>,
    return
  }
  func.func @transform_0(%arg0: i32) -> (i32, i32, i32, i32) {
    %c0_i32 = arith.constant 0 : i32
    %c0_i32_0 = arith.constant 0 : i32
    %c0_i32_1 = arith.constant 0 : i32
    %c0_i32_2 = arith.constant 0 : i32
    return %arg0, %c0_i32, %c0_i32_0, %c0_i32_1 : i32, i32, i32, i32
  }
  func.func @transform_1(%arg0: i32) -> i32 {
    %c0_i32 = arith.constant 0 : i32
    %c0_i32_0 = arith.constant 0 : i32
    return %c0_i32 : i32
  }
  func.func @transform_2(%arg0: i32) -> i32 {
    %c0_i32 = arith.constant 0 : i32
    %c0_i32_0 = arith.constant 0 : i32
    return %c0_i32 : i32
  }
  func.func @transform_3(%arg0: i32) -> i32 {
    %c0_i32 = arith.constant 0 : i32
    %c0_i32_0 = arith.constant 0 : i32
    return %c0_i32 : i32
  }
  func.func @transform_4(%arg0: i32) -> i32 {
    %c0_i32 = arith.constant 0 : i32
    %c0_i32_0 = arith.constant 0 : i32
    return %c0_i32 : i32
  }
  func.func @transform_5(%arg0: i32) -> i32 {
    %c0_i32 = arith.constant 0 : i32
    %c0_i32_0 = arith.constant 0 : i32
    return %c0_i32 : i32
  }
  func.func @transform_6(%arg0: i32) -> i32 {
    %c0_i32 = arith.constant 0 : i32
    %c0_i32_0 = arith.constant 0 : i32
    return %c0_i32 : i32
  }
  func.func @transform_7(%arg0: i32) -> (i32, i32, i32, i32) {
    %c0_i32 = arith.constant 0 : i32
    %c0_i32_0 = arith.constant 0 : i32
    %c0_i32_1 = arith.constant 0 : i32
    %c0_i32_2 = arith.constant 0 : i32
    return %arg0, %c0_i32, %c0_i32_0, %c0_i32_1 : i32, i32, i32, i32
  }
}

</mosaic_0001>

<llo_original>
// kernel: tpu_custom_call.1
$region0: #{tpu_custom_call.1}
  #allocation0 [shape = 'u32[]', space=smem, size = 0x4, offset = 0x4, fixed_abs, tag = 'smem constant byte address 0x4 - core index']
  #allocation1 [shape = 'u32[144,128]{1,0:T(1,128)}', space=vmem, size = 0x12000, scoped, tag = 'internal scratch']
  #allocation2 [shape = 'f32[18,18]{1,0:T(8,128)}', space=vmem, size = 0x3000, scoped, tag = 'scratch operand']
  #allocation3 [shape = 'f32[16,18]{1,0:T(8,128)}', space=vmem, size = 0x2000, scoped, tag = 'scratch operand']
  #allocation4 [shape = 'f32[18,16]{1,0:T(8,128)}', space=vmem, size = 0x3000, scoped, tag = 'scratch operand']
  %s0 = inlined_call_operand.hbm [shape: f32[2,4,16,16], index: 0, kind: input, shape index: {}]
  %s1 = inlined_call_operand.vmem [shape: f32[36], index: 1, kind: input, shape index: {}]
  %s2 = inlined_call_operand.vmem [shape: f32[36], index: 2, kind: input, shape index: {}]
  %s3 = inlined_call_operand.vmem [shape: f32[24], index: 3, kind: input, shape index: {}]
  %s4 = inlined_call_operand.vmem [shape: f32[24], index: 4, kind: input, shape index: {}]
  %s5 = inlined_call_operand.vmem [shape: f32[2], index: 5, kind: input, shape index: {}]
  %s6 = inlined_call_operand.vmem [shape: f32[2], index: 6, kind: input, shape index: {}]
  %s7 = inlined_call_operand.hbm [shape: f32[2,4,16,16], index: 7, kind: output, shape index: {}]
  %s8 = sld [smem:[#allocation0]]
  $region89: #{tpu_custom_call.1} parent=0
    _
  %s10 = ssub.s32 1, %s8
  %s11 = scalar_select 0, %s10, %s8
  $region1: #{tpu_custom_call.1} parent=0
    #allocation5 [shape = 'u8[65536]{0}', space=vmem, size = 0x10000, scoped, tag = 'input window, operand 0']
    #allocation6 [shape = 's32[2]{0}', space=sflag, size = 0x8, scoped, tag = 'scoped memory for tpu_custom_call.1']
    #allocation7 [shape = 's32[2]{0}', space=sflag, size = 0x8, scoped, tag = 'scoped memory for tpu_custom_call.1']
    #allocation8 [shape = 's32[2]{0}', space=sflag, size = 0x8, scoped, tag = 'scoped memory for tpu_custom_call.1']
    #allocation9 [shape = 'u8[512]{0}', space=smem, size = 0x200, scoped, tag = 'input window, operand 1, single buffered']
    #allocation10 [shape = 'u8[512]{0}', space=smem, size = 0x200, scoped, tag = 'input window, operand 2, single buffered']
    #allocation11 [shape = 's32[1]{0}', space=sflag, size = 0x4, scoped, tag = 'scoped memory for tpu_custom_call.1']
    #allocation12 [shape = 'u8[512]{0}', space=smem, size = 0x200, scoped, tag = 'input window, operand 3, single buffered']
    #allocation13 [shape = 'u8[512]{0}', space=smem, size = 0x200, scoped, tag = 'input window, operand 4, single buffered']
    #allocation14 [shape = 's32[1]{0}', space=sflag, size = 0x4, scoped, tag = 'scoped memory for tpu_custom_call.1']
    #allocation15 [shape = 'u8[512]{0}', space=smem, size = 0x200, scoped, tag = 'input window, operand 5, single buffered']
    #allocation16 [shape = 'u8[512]{0}', space=smem, size = 0x200, scoped, tag = 'input window, operand 6, single buffered']
    #allocation17 [shape = 's32[1]{0}', space=sflag, size = 0x4, scoped, tag = 'scoped memory for tpu_custom_call.1']
    #allocation18 [shape = 'u8[65536]{0}', space=vmem, size = 0x10000, scoped, tag = 'output window, operand 0']
    %12 = vsyncpa [#allocation6], 0
    %s13 = scalar_lea.sflag [#allocation6], 1
    %14 = vsyncpa %s13, 0
    %15 = vsyncpa [#allocation8], 0
    %16 = vsyncpa [#allocation11], 0
    %17 = vsyncpa [#allocation14], 0
    %18 = vsyncpa [#allocation17], 0
    %19 = vsyncpa [#allocation7], 0
    %s20 = scalar_lea.sflag [#allocation7], 1
    %21 = vsyncpa %s20, 0
    loop: start=0, step=1, limit=4
    $region2: #{tpu_custom_call.1} parent=1 // loop_pre_header
      _
    $region3: #{tpu_custom_call.1} parent=1 // loop_header
      %s23 = sphi 0, %s27
      %p24 = scmp.ge.s32.totalorder %s23, 4
      %s33 = sphi 0, %s35
      %s36 = sphi 0, %s33
      %s37 = sphi 0, %s36
      %s53 = sphi 0, %s37
      %s57 = sphi 0, %s57
      %s59 = sphi 0, %s57
      %s60 = sphi 0, %s59
      %s74 = sphi 0, %s60
      %s78 = sphi 0, %s78
      %s80 = sphi 0, %s78
      %s81 = sphi 0, %s80
      %s95 = sphi 0, %s81
      %s99 = sphi 0, %s99
      %s101 = sphi 0, %s99
      %s102 = sphi 0, %s101
      %s116 = sphi 0, %s102
      %s120 = sphi 0, %s120
      %s122 = sphi 0, %s120
      %s123 = sphi 0, %s122
      %s137 = sphi 0, %s123
      %s141 = sphi 0, %s141
      %s143 = sphi 0, %s141
      %s144 = sphi 0, %s143
      %s158 = sphi 0, %s144
      %s162 = sphi 0, %s162
      %s164 = sphi 0, %s162
      %s165 = sphi 0, %s164
      %s179 = sphi 0, %s165
      %s185 = sphi 0, %s187
      %s188 = sphi 0, %s185
      %s189 = sphi 0, %s188
      %s205 = sphi 0, %s189
    $region4: #{tpu_custom_call.1} parent=1 // loop_header_branch
      %26 = sbr.rel (%p24) target = $region8
    $region5: #{tpu_custom_call.1} parent=1 // loop_body
      %s28 = ssub.s32 %s23, 1
      %s29 = ssub.s32 %s23, 2
      %s30 = sadd.s32 %s23, 1
      %s31 = ssub.s32 %s23, %s30
      %p32 = scmp.eq.s32.totalorder %s31, 0
      %s34 = sadd.s32 %s33, 1
      %s35 = scalar_select %p32, %s33, %s34
      %p38 = pneg %p32
      %p39 = scmp.eq.s32.totalorder %s23, 1
      %p40 = por %p38, %p39
      %p41 = scmp.ne.s32.totalorder %s33, %s36
      %p42 = scmp.eq.s32.totalorder %s23, 0
      %p43 = por %p41, %p42
      %p44 = scmp.ne.s32.totalorder %s33, %s36
      %p45 = scmp.eq.s32.totalorder %s28, 1
      %p46 = por %p44, %p45
      %p47 = scmp.ne.s32.totalorder %s36, %s37
      %p48 = scmp.eq.s32.totalorder %s28, 0
      %p49 = por %p47, %p48
      %p50 = scmp.ne.s32.totalorder %s36, %s37
      %p51 = scmp.eq.s32.totalorder %s29, 1
      %p52 = por %p50, %p51
      %p54 = scmp.ne.s32.totalorder %s37, %s53
      %p55 = scmp.eq.s32.totalorder %s29, 0
      %p56 = por %p54, %p55
      %s58 = sadd.s32 %s57, 1
      %p61 = scmp.eq.s32.totalorder %s23, 1
      %p62 = scmp.ne.s32.totalorder %s57, %s59
      %p63 = scmp.eq.s32.totalorder %s23, 0
      %p64 = por %p62, %p63
      %p65 = scmp.ne.s32.totalorder %s57, %s59
      %p66 = scmp.eq.s32.totalorder %s28, 1
      %p67 = por %p65, %p66
      %p68 = scmp.ne.s32.totalorder %s59, %s60
      %p69 = scmp.eq.s32.totalorder %s28, 0
      %p70 = por %p68, %p69
      %p71 = scmp.ne.s32.totalorder %s59, %s60
      %p72 = scmp.eq.s32.totalorder %s29, 1
      %p73 = por %p71, %p72
      %p75 = scmp.ne.s32.totalorder %s60, %s74
      %p76 = scmp.eq.s32.totalorder %s29, 0
      %p77 = por %p75, %p76
      %s79 = sadd.s32 %s78, 1
      %p82 = scmp.eq.s32.totalorder %s23, 1
      %p83 = scmp.ne.s32.totalorder %s78, %s80
      %p84 = scmp.eq.s32.totalorder %s23, 0
      %p85 = por %p83, %p84
      %p86 = scmp.ne.s32.totalorder %s78, %s80
      %p87 = scmp.eq.s32.totalorder %s28, 1
      %p88 = por %p86, %p87
      %p89 = scmp.ne.s32.totalorder %s80, %s81
      %p90 = scmp.eq.s32.totalorder %s28, 0
      %p91 = por %p89, %p90
      %p92 = scmp.ne.s32.totalorder %s80, %s81
      %p93 = scmp.eq.s32.totalorder %s29, 1
      %p94 = por %p92, %p93
      %p96 = scmp.ne.s32.totalorder %s81, %s95
      %p97 = scmp.eq.s32.totalorder %s29, 0
      %p98 = por %p96, %p97
      %s100 = sadd.s32 %s99, 1
      %p103 = scmp.eq.s32.totalorder %s23, 1
      %p104 = scmp.ne.s32.totalorder %s99, %s101
      %p105 = scmp.eq.s32.totalorder %s23, 0
      %p106 = por %p104, %p105
      %p107 = scmp.ne.s32.totalorder %s99, %s101
      %p108 = scmp.eq.s32.totalorder %s28, 1
      %p109 = por %p107, %p108
      %p110 = scmp.ne.s32.totalorder %s101, %s102
      %p111 = scmp.eq.s32.totalorder %s28, 0
      %p112 = por %p110, %p111
      %p113 = scmp.ne.s32.totalorder %s101, %s102
      %p114 = scmp.eq.s32.totalorder %s29, 1
      %p115 = por %p113, %p114
      %p117 = scmp.ne.s32.totalorder %s102, %s116
      %p118 = scmp.eq.s32.totalorder %s29, 0
      %p119 = por %p117, %p118
      %s121 = sadd.s32 %s120, 1
      %p124 = scmp.eq.s32.totalorder %s23, 1
      %p125 = scmp.ne.s32.totalorder %s120, %s122
      %p126 = scmp.eq.s32.totalorder %s23, 0
      %p127 = por %p125, %p126
      %p128 = scmp.ne.s32.totalorder %s120, %s122
      %p129 = scmp.eq.s32.totalorder %s28, 1
      %p130 = por %p128, %p129
      %p131 = scmp.ne.s32.totalorder %s122, %s123
      %p132 = scmp.eq.s32.totalorder %s28, 0
      %p133 = por %p131, %p132
      %p134 = scmp.ne.s32.totalorder %s122, %s123
      %p135 = scmp.eq.s32.totalorder %s29, 1
      %p136 = por %p134, %p135
      %p138 = scmp.ne.s32.totalorder %s123, %s137
      %p139 = scmp.eq.s32.totalorder %s29, 0
      %p140 = por %p138, %p139
      %s142 = sadd.s32 %s141, 1
      %p145 = scmp.eq.s32.totalorder %s23, 1
      %p146 = scmp.ne.s32.totalorder %s141, %s143
      %p147 = scmp.eq.s32.totalorder %s23, 0
      %p148 = por %p146, %p147
      %p149 = scmp.ne.s32.totalorder %s141, %s143
      %p150 = scmp.eq.s32.totalorder %s28, 1
      %p151 = por %p149, %p150
      %p152 = scmp.ne.s32.totalorder %s143, %s144
      %p153 = scmp.eq.s32.totalorder %s28, 0
      %p154 = por %p152, %p153
      %p155 = scmp.ne.s32.totalorder %s143, %s144
      %p156 = scmp.eq.s32.totalorder %s29, 1
      %p157 = por %p155, %p156
      %p159 = scmp.ne.s32.totalorder %s144, %s158
      %p160 = scmp.eq.s32.totalorder %s29, 0
      %p161 = por %p159, %p160
      %s163 = sadd.s32 %s162, 1
      %p166 = scmp.eq.s32.totalorder %s23, 1
      %p167 = scmp.ne.s32.totalorder %s162, %s164
      %p168 = scmp.eq.s32.totalorder %s23, 0
      %p169 = por %p167, %p168
      %p170 = scmp.ne.s32.totalorder %s162, %s164
      %p171 = scmp.eq.s32.totalorder %s28, 1
      %p172 = por %p170, %p171
      %p173 = scmp.ne.s32.totalorder %s164, %s165
      %p174 = scmp.eq.s32.totalorder %s28, 0
      %p175 = por %p173, %p174
      %p176 = scmp.ne.s32.totalorder %s164, %s165
      %p177 = scmp.eq.s32.totalorder %s29, 1
      %p178 = por %p176, %p177
      %p180 = scmp.ne.s32.totalorder %s165, %s179
      %p181 = scmp.eq.s32.totalorder %s29, 0
      %p182 = por %p180, %p181
      %s183 = ssub.s32 %s23, %s30
      %p184 = scmp.eq.s32.totalorder %s183, 0
      %s186 = sadd.s32 %s185, 1
      %s187 = scalar_select %p184, %s185, %s186
      %p190 = pneg %p184
      %p191 = scmp.eq.s32.totalorder %s23, 1
      %p192 = por %p190, %p191
      %p193 = scmp.ne.s32.totalorder %s185, %s188
      %p194 = scmp.eq.s32.totalorder %s23, 0
      %p195 = por %p193, %p194
      %p196 = scmp.ne.s32.totalorder %s185, %s188
      %p197 = scmp.eq.s32.totalorder %s28, 1
      %p198 = por %p196, %p197
      %p199 = scmp.ne.s32.totalorder %s188, %s189
      %p200 = scmp.eq.s32.totalorder %s28, 0
      %p201 = por %p199, %p200
      %p202 = scmp.ne.s32.totalorder %s188, %s189
      %p203 = scmp.eq.s32.totalorder %s29, 1
      %p204 = por %p202, %p203
      %p206 = scmp.ne.s32.totalorder %s189, %s205
      %p207 = scmp.eq.s32.totalorder %s29, 0
      %p208 = por %p206, %p207
      %p209 = scmp.le.s32.totalorder 1, %s23
      %p210 = scmp.lt.s32.totalorder %s23, 3
      %p211 = pnand %p209, %p210
      %p212 = pneg %p211
      // Predicated region
      $region9: #{tpu_custom_call.1} parent=5 // pred_check
        _
      $region10: #{tpu_custom_call.1} parent=5 // pred_check_branch
        %214 = sbr.rel (%p211) target = $region12
      $region11: #{tpu_custom_call.1} parent=5 // pred_region
        %s215 = ssub.s32 %s23, 1
        // Predicated region
        $region13: #{tpu_custom_call.1} parent=11 // pred_check
          %p216 = pneg %p70
        $region14: #{tpu_custom_call.1} parent=11 // pred_check_branch
          %218 = sbr.rel (%p216) target = $region16
        $region15: #{tpu_custom_call.1} parent=11 // pred_region
          %s220 = ssub.s32 16, 16
          %221 = vsyncadd [#allocation8], %s220
          %s223 = sshll.u32 %s1, 4
          %s224 = int_to_ptr.vmem [resolvable:$true] %s223
          %226 = dma.vmem_to_smem %s224, 16, [#allocation9], [#allocation8]
        $region16: #{tpu_custom_call.1} parent=11 // pred_fallthru
          _
        // Predicated region
        $region17: #{tpu_custom_call.1} parent=11 // pred_check
          %p227 = pneg %p91
        $region18: #{tpu_custom_call.1} parent=11 // pred_check_branch
          %229 = sbr.rel (%p227) target = $region20
        $region19: #{tpu_custom_call.1} parent=11 // pred_region
          %s231 = ssub.s32 16, 16
          %232 = vsyncadd [#allocation11], %s231
          %s234 = sshll.u32 %s2, 4
          %s235 = int_to_ptr.vmem [resolvable:$true] %s234
          %237 = dma.vmem_to_smem %s235, 16, [#allocation10], [#allocation11]
        $region20: #{tpu_custom_call.1} parent=11 // pred_fallthru
          _
        // Predicated region
        $region21: #{tpu_custom_call.1} parent=11 // pred_check
          %p238 = pneg %p112
        $region22: #{tpu_custom_call.1} parent=11 // pred_check_branch
          %240 = sbr.rel (%p238) target = $region24
        $region23: #{tpu_custom_call.1} parent=11 // pred_region
          %s242 = ssub.s32 16, 16
          %243 = vsyncadd [#allocation11], %s242
          %s245 = sshll.u32 %s3, 4
          %s246 = int_to_ptr.vmem [resolvable:$true] %s245
          %248 = dma.vmem_to_smem %s246, 16, [#allocation12], [#allocation11]
        $region24: #{tpu_custom_call.1} parent=11 // pred_fallthru
          _
        // Predicated region
        $region25: #{tpu_custom_call.1} parent=11 // pred_check
          %p249 = pneg %p133
        $region26: #{tpu_custom_call.1} parent=11 // pred_check_branch
          %251 = sbr.rel (%p249) target = $region28
        $region27: #{tpu_custom_call.1} parent=11 // pred_region
          %s253 = ssub.s32 16, 16
          %254 = vsyncadd [#allocation14], %s253
          %s256 = sshll.u32 %s4, 4
          %s257 = int_to_ptr.vmem [resolvable:$true] %s256
          %259 = dma.vmem_to_smem %s257, 16, [#allocation13], [#allocation14]
        $region28: #{tpu_custom_call.1} parent=11 // pred_fallthru
          _
        // Predicated region
        $region29: #{tpu_custom_call.1} parent=11 // pred_check
          %p260 = pneg %p154
        $region30: #{tpu_custom_call.1} parent=11 // pred_check_branch
          %262 = sbr.rel (%p260) target = $region32
        $region31: #{tpu_custom_call.1} parent=11 // pred_region
          %s264 = ssub.s32 16, 16
          %265 = vsyncadd [#allocation14], %s264
          %s267 = sshll.u32 %s5, 4
          %s268 = int_to_ptr.vmem [resolvable:$true] %s267
          %270 = dma.vmem_to_smem %s268, 16, [#allocation15], [#allocation14]
        $region32: #{tpu_custom_call.1} parent=11 // pred_fallthru
          _
        // Predicated region
        $region33: #{tpu_custom_call.1} parent=11 // pred_check
          %p271 = pneg %p175
        $region34: #{tpu_custom_call.1} parent=11 // pred_check_branch
          %273 = sbr.rel (%p271) target = $region36
        $region35: #{tpu_custom_call.1} parent=11 // pred_region
          %s275 = ssub.s32 16, 16
          %276 = vsyncadd [#allocation17], %s275
          %s278 = sshll.u32 %s6, 4
          %s279 = int_to_ptr.vmem [resolvable:$true] %s278
          %281 = dma.vmem_to_smem %s279, 16, [#allocation16], [#allocation17]
        $region36: #{tpu_custom_call.1} parent=11 // pred_fallthru
          _
      $region12: #{tpu_custom_call.1} parent=5 // pred_fallthru
        _
      %p282 = scmp.lt.s32.totalorder %s23, 2
      // Predicated region
      $region37: #{tpu_custom_call.1} parent=5 // pred_check
        %p283 = pneg %p282
      $region38: #{tpu_custom_call.1} parent=5 // pred_check_branch
        %285 = sbr.rel (%p283) target = $region40
      $region39: #{tpu_custom_call.1} parent=5 // pred_region
        // Predicated region
        $region41: #{tpu_custom_call.1} parent=39 // pred_check
          %p286 = pneg %p43
        $region42: #{tpu_custom_call.1} parent=39 // pred_check_branch
          %288 = sbr.rel (%p286) target = $region44
        $region43: #{tpu_custom_call.1} parent=39 // pred_region
          %s289 = sand.u32 %s33, 1
          %s290 = scalar_lea.sflag [#allocation6], %s289
          %s291 = sand.u32 %s33, 1
          %s292 = smul.addr %s291, 64
          %s293 = scalar_lea.vmem [#allocation5], %s292
          %s295 = ssub.s32 1024, 1024
          %296 = vsyncadd %s290, %s295
          %s297 = smul.addr %s23, 8
          %s298 = smul.addr %s297, 128
          %s299 = scalar_lea.hbm %s0, %s298
          %s300 = sshll.u32 %s293, 4
          %s301 = int_to_ptr.vmem [resolvable:$true] %s300
          %306 = dma.hbm_to_vmem [thread:$0]  %s299, 1024, %s301, %s290, 128, 128, 8
        $region44: #{tpu_custom_call.1} parent=39 // pred_fallthru
          _
      $region40: #{tpu_custom_call.1} parent=5 // pred_fallthru
        _
      %p307 = scmp.le.s32.totalorder 1, %s23
      %p308 = scmp.lt.s32.totalorder %s23, 3
      %p309 = pnand %p307, %p308
      %p310 = pneg %p309
      // Predicated region
      $region45: #{tpu_custom_call.1} parent=5 // pred_check
        _
      $region46: #{tpu_custom_call.1} parent=5 // pred_check_branch
        %312 = sbr.rel (%p309) target = $region48
      $region47: #{tpu_custom_call.1} parent=5 // pred_region
        %s313 = ssub.s32 %s23, 1
        %s314 = sand.u32 %s36, 1
        %s315 = scalar_lea.sflag [#allocation6], %s314
        %s316 = sand.u32 %s36, 1
        %s317 = smul.addr %s316, 64
        %s318 = scalar_lea.vmem [#allocation5], %s317
        // Predicated region
        $region49: #{tpu_custom_call.1} parent=47 // pred_check
          %p319 = pneg %p49
        $region50: #{tpu_custom_call.1} parent=47 // pred_check_branch
          %321 = sbr.rel (%p319) target = $region52
        $region51: #{tpu_custom_call.1} parent=47 // pred_region
          %322 = dma.done %s315, 1024
        $region52: #{tpu_custom_call.1} parent=47 // pred_fallthru
          _
        // Predicated region
        $region53: #{tpu_custom_call.1} parent=47 // pred_check
          %p323 = pneg %p70
        $region54: #{tpu_custom_call.1} parent=47 // pred_check_branch
          %325 = sbr.rel (%p323) target = $region56
        $region55: #{tpu_custom_call.1} parent=47 // pred_region
          %326 = dma.done [#allocation8], 16
        $region56: #{tpu_custom_call.1} parent=47 // pred_fallthru
          _
        // Predicated region
        $region57: #{tpu_custom_call.1} parent=47 // pred_check
          %p327 = pneg %p91
        $region58: #{tpu_custom_call.1} parent=47 // pred_check_branch
          %329 = sbr.rel (%p327) target = $region60
        $region59: #{tpu_custom_call.1} parent=47 // pred_region
          %330 = dma.done [#allocation11], 16
        $region60: #{tpu_custom_call.1} parent=47 // pred_fallthru
          _
        // Predicated region
        $region61: #{tpu_custom_call.1} parent=47 // pred_check
          %p331 = pneg %p112
        $region62: #{tpu_custom_call.1} parent=47 // pred_check_branch
          %333 = sbr.rel (%p331) target = $region64
        $region63: #{tpu_custom_call.1} parent=47 // pred_region
          %334 = dma.done [#allocation11], 16
        $region64: #{tpu_custom_call.1} parent=47 // pred_fallthru
          _
        // Predicated region
        $region65: #{tpu_custom_call.1} parent=47 // pred_check
          %p335 = pneg %p133
        $region66: #{tpu_custom_call.1} parent=47 // pred_check_branch
          %337 = sbr.rel (%p335) target = $region68
        $region67: #{tpu_custom_call.1} parent=47 // pred_region
          %338 = dma.done [#allocation14], 16
        $region68: #{tpu_custom_call.1} parent=47 // pred_fallthru
          _
        // Predicated region
        $region69: #{tpu_custom_call.1} parent=47 // pred_check
          %p339 = pneg %p154
        $region70: #{tpu_custom_call.1} parent=47 // pred_check_branch
          %341 = sbr.rel (%p339) target = $region72
        $region71: #{tpu_custom_call.1} parent=47 // pred_region
          %342 = dma.done [#allocation14], 16
        $region72: #{tpu_custom_call.1} parent=47 // pred_fallthru
          _
        // Predicated region
        $region73: #{tpu_custom_call.1} parent=47 // pred_check
          %p343 = pneg %p175
        $region74: #{tpu_custom_call.1} parent=47 // pred_check_branch
          %345 = sbr.rel (%p343) target = $region76
        $region75: #{tpu_custom_call.1} parent=47 // pred_region
          %346 = dma.done [#allocation17], 16
        $region76: #{tpu_custom_call.1} parent=47 // pred_fallthru
          _
        %347 = sfence
        %s348 = sand.u32 %s36, 1
        %s349 = scalar_lea.sflag [#allocation6], %s348
        %s350 = sand.u32 %s36, 1
        %s351 = smul.addr %s350, 64
        %s352 = scalar_lea.vmem [#allocation5], %s351
        %p353 = pneg %p49
        %p354 = pneg %p46
        %p355 = pneg %p70
        %p356 = pneg %p67
        %p357 = pneg %p91
        %p358 = pneg %p88
        %p359 = pneg %p112
        %p360 = pneg %p109
        %p361 = pneg %p133
        %p362 = pneg %p130
        %p363 = pneg %p154
        %p364 = pneg %p151
        %p365 = pneg %p175
        %p366 = pneg %p172
        %p367 = pneg %p201
        %p368 = pneg %p198
        %s369 = sand.u32 %s188, 1
        %s370 = scalar_lea.sflag [#allocation7], %s369
        %s371 = sand.u32 %s188, 1
        %s372 = smul.addr %s371, 64
        %s373 = scalar_lea.vmem [#allocation18], %s372
        %vm374 = vcmask 146432
        %375 = vst.msk [vmem:[#allocation2] sm:$0xff] %vm374, 0.0
        %376 = vst.msk [vmem:[#allocation2 + $0x8] sm:$0xff] %vm374, 0.0
        %vm377 = vcmask 140288
        %378 = vst.msk [vmem:[#allocation2 + $0x10] sm:$0x3] %vm377, 0.0
        %379 = vst.msk [vmem:[#allocation3] sm:$0xff] %vm374, 0.0
        %380 = vst.msk [vmem:[#allocation3 + $0x8] sm:$0xff] %vm374, 0.0
        %vm381 = vcmask 130048
        %382 = vst.msk [vmem:[#allocation4] sm:$0xff] %vm381, 0.0
        %383 = vst.msk [vmem:[#allocation4 + $0x8] sm:$0xff] %vm381, 0.0
        %vm384 = vcmask 123904
        %385 = vst.msk [vmem:[#allocation4 + $0x10] sm:$0x3] %vm384, 0.0
        %s386 = sld [smem:[#allocation15]]
        %v387 = vstv %s386
        %v388 = vadd.f32 %v387, 0.0
        %s389 = sld [smem:[#allocation15 + $0x1]]
        %v390 = vstv %s389
        %v391 = vadd.f32 %v390, 0.0
        %s392 = sld [smem:[#allocation16]]
        %v393 = vstv %s392
        %v394 = vadd.f32 %v393, 0.0
        %s395 = sld [smem:[#allocation16 + $0x1]]
        %v396 = vstv %s395
        %v397 = vadd.f32 %v396, 0.0
        %v398 = vld [vmem:[%s318] sm:$0xff]
        %v399 = vld [vmem:[%s318 + $0x8] sm:$0xff]
        %402 = vrot.lane.b32.xlu0 %v398, 1
        %v403 = vpop.permute.xlu0 %402
        %404 = vrot.lane.b32.xlu0 %v399, 1
        %v405 = vpop.permute.xlu0 %404
        %vm408 = vcmask 138248
        %409 = vst.msk [vmem:[#allocation2 + $0x1] sm:$0xff] %vm408, %v403
        %410 = vst.msk [vmem:[#allocation2 + $0x9] sm:$0xff] %vm408, %v405
        %v411 = vld [vmem:[#allocation2] sm:$0xff]
        %v412 = vld [vmem:[#allocation2 + $0x8] sm:$0xff]
        %v413 = vld [vmem:[#allocation2 + $0x10] sm:$0x3]
        %s414 = sld [smem:[#allocation9]]
        %v415 = vstv %s414
        %v416 = vmul.f32 %v415, %v411
        %v417 = vmul.f32 %v415, %v412
        %v418 = vadd.f32 %v416, 0.0
        %v419 = vadd.f32 %v417, 0.0
        %s420 = sld [smem:[#allocation10]]
        %v421 = vstv %s420
        %v422 = vmul.f32 %v421, %v411
        %v423 = vmul.f32 %v421, %v412
        %v424 = vadd.f32 %v422, 0.0
        %v425 = vadd.f32 %v423, 0.0
        %s426 = sld [smem:[#allocation9 + $0x1]]
        %v427 = vstv %s426
        %v428 = vmul.f32 %v427, %v411
        %v429 = vmul.f32 %v427, %v412
        %432 = vrot.lane.b32.xlu0 %v428, 127
        %v433 = vpop.permute.xlu0 %432
        %434 = vrot.lane.b32.xlu0 %v429, 127
        %v435 = vpop.permute.xlu0 %434
        %v438 = vadd.f32 %v418, %v433
        %v439 = vadd.f32 %v419, %v435
        %s440 = sld [smem:[#allocation10 + $0x1]]
        %v441 = vstv %s440
        %v442 = vmul.f32 %v441, %v411
        %v443 = vmul.f32 %v441, %v412
        %446 = vrot.lane.b32.xlu0 %v442, 127
        %v447 = vpop.permute.xlu0 %446
        %448 = vrot.lane.b32.xlu0 %v443, 127
        %v449 = vpop.permute.xlu0 %448
        %v452 = vadd.f32 %v424, %v447
        %v453 = vadd.f32 %v425, %v449
        %s454 = sld [smem:[#allocation9 + $0x2]]
        %v455 = vstv %s454
        %v456 = vmul.f32 %v455, %v411
        %v457 = vmul.f32 %v455, %v412
        %460 = vrot.lane.b32.xlu0 %v456, 126
        %v461 = vpop.permute.xlu0 %460
        %462 = vrot.lane.b32.xlu0 %v457, 126
        %v463 = vpop.permute.xlu0 %462
        %v466 = vadd.f32 %v438, %v461
        %v467 = vadd.f32 %v439, %v463
        %s468 = sld [smem:[#allocation10 + $0x2]]
        %v469 = vstv %s468
        %v470 = vmul.f32 %v469, %v411
        %v471 = vmul.f32 %v469, %v412
        %474 = vrot.lane.b32.xlu0 %v470, 126
        %v475 = vpop.permute.xlu0 %474
        %476 = vrot.lane.b32.xlu0 %v471, 126
        %v477 = vpop.permute.xlu0 %476
        %v480 = vadd.f32 %v452, %v475
        %v481 = vadd.f32 %v453, %v477
        %s482 = sld [smem:[#allocation9 + $0x3]]
        %v483 = vstv %s482
        %v484 = vmul.f32 %v483, %v411
        %v485 = vmul.f32 %v483, %v412
        %v486 = vmul.f32 %v483, %v413
        %vm490 = vcmask 1046528
        %v491 = vrot.slane %v484, 1
        %v492 = vrot.slane %v485, 1
        %v493 = vsel %vm490, %v491, %v492
        %v494 = vrot.slane %v486, 1
        %v495 = vsel %vm490, %v492, %v494
        %v498 = vadd.f32 %v466, %v493
        %v499 = vadd.f32 %v467, %v495
        %s500 = sld [smem:[#allocation10 + $0x3]]
        %v501 = vstv %s500
        %v502 = vmul.f32 %v501, %v411
        %v503 = vmul.f32 %v501, %v412
        %v504 = vmul.f32 %v501, %v413
        %v508 = vrot.slane %v502, 1
        %v509 = vrot.slane %v503, 1
        %v510 = vsel %vm490, %v508, %v509
        %v511 = vrot.slane %v504, 1
        %v512 = vsel %vm490, %v509, %v511
        %v515 = vadd.f32 %v480, %v510
        %v516 = vadd.f32 %v481, %v512
        %s517 = sld [smem:[#allocation9 + $0x4]]
        %v518 = vstv %s517
        %v519 = vmul.f32 %v518, %v411
        %v520 = vmul.f32 %v518, %v412
        %v521 = vmul.f32 %v518, %v413
        %v525 = vrot.slane %v519, 1
        %v526 = vrot.slane %v520, 1
        %v527 = vsel %vm490, %v525, %v526
        %v528 = vrot.slane %v521, 1
        %v529 = vsel %vm490, %v526, %v528
        %530 = vrot.lane.b32.xlu0 %v527, 127
        %v531 = vpop.permute.xlu0 %530
        %532 = vrot.lane.b32.xlu0 %v529, 127
        %v533 = vpop.permute.xlu0 %532
        %v536 = vadd.f32 %v498, %v531
        %v537 = vadd.f32 %v499, %v533
        %s538 = sld [smem:[#allocation10 + $0x4]]
        %v539 = vstv %s538
        %v540 = vmul.f32 %v539, %v411
        %v541 = vmul.f32 %v539, %v412
        %v542 = vmul.f32 %v539, %v413
        %v546 = vrot.slane %v540, 1
        %v547 = vrot.slane %v541, 1
        %v548 = vsel %vm490, %v546, %v547
        %v549 = vrot.slane %v542, 1
        %v550 = vsel %vm490, %v547, %v549
        %551 = vrot.lane.b32.xlu0 %v548, 127
        %v552 = vpop.permute.xlu0 %551
        %553 = vrot.lane.b32.xlu0 %v550, 127
        %v554 = vpop.permute.xlu0 %553
        %v557 = vadd.f32 %v515, %v552
        %v558 = vadd.f32 %v516, %v554
        %s559 = sld [smem:[#allocation9 + $0x5]]
        %v560 = vstv %s559
        %v561 = vmul.f32 %v560, %v411
        %v562 = vmul.f32 %v560, %v412
        %v563 = vmul.f32 %v560, %v413
        %v567 = vrot.slane %v561, 1
        %v568 = vrot.slane %v562, 1
        %v569 = vsel %vm490, %v567, %v568
        %v570 = vrot.slane %v563, 1
        %v571 = vsel %vm490, %v568, %v570
        %572 = vrot.lane.b32.xlu0 %v569, 126
        %v573 = vpop.permute.xlu0 %572
        %574 = vrot.lane.b32.xlu0 %v571, 126
        %v575 = vpop.permute.xlu0 %574
        %v578 = vadd.f32 %v536, %v573
        %v579 = vadd.f32 %v537, %v575
        %s580 = sld [smem:[#allocation10 + $0x5]]
        %v581 = vstv %s580
        %v582 = vmul.f32 %v581, %v411
        %v583 = vmul.f32 %v581, %v412
        %v584 = vmul.f32 %v581, %v413
        %v588 = vrot.slane %v582, 1
        %v589 = vrot.slane %v583, 1
        %v590 = vsel %vm490, %v588, %v589
        %v591 = vrot.slane %v584, 1
        %v592 = vsel %vm490, %v589, %v591
        %593 = vrot.lane.b32.xlu0 %v590, 126
        %v594 = vpop.permute.xlu0 %593
        %595 = vrot.lane.b32.xlu0 %v592, 126
        %v596 = vpop.permute.xlu0 %595
        %v599 = vadd.f32 %v557, %v594
        %v600 = vadd.f32 %v558, %v596
        %s601 = sld [smem:[#allocation9 + $0x6]]
        %v602 = vstv %s601
        %v603 = vmul.f32 %v602, %v411
        %v604 = vmul.f32 %v602, %v412
        %v605 = vmul.f32 %v602, %v413
        %vm609 = vcmask 1045504
        %v610 = vrot.slane %v603, 2
        %v611 = vrot.slane %v604, 2
        %v612 = vsel %vm609, %v610, %v611
        %v613 = vrot.slane %v605, 2
        %v614 = vsel %vm609, %v611, %v613
        %v617 = vadd.f32 %v578, %v612
        %v618 = vadd.f32 %v579, %v614
        %s619 = sld [smem:[#allocation10 + $0x6]]
        %v620 = vstv %s619
        %v621 = vmul.f32 %v620, %v411
        %v622 = vmul.f32 %v620, %v412
        %v623 = vmul.f32 %v620, %v413
        %v627 = vrot.slane %v621, 2
        %v628 = vrot.slane %v622, 2
        %v629 = vsel %vm609, %v627, %v628
        %v630 = vrot.slane %v623, 2
        %v631 = vsel %vm609, %v628, %v630
        %v634 = vadd.f32 %v599, %v629
        %v635 = vadd.f32 %v600, %v631
        %s636 = sld [smem:[#allocation9 + $0x7]]
        %v637 = vstv %s636
        %v638 = vmul.f32 %v637, %v411
        %v639 = vmul.f32 %v637, %v412
        %v640 = vmul.f32 %v637, %v413
        %v644 = vrot.slane %v638, 2
        %v645 = vrot.slane %v639, 2
        %v646 = vsel %vm609, %v644, %v645
        %v647 = vrot.slane %v640, 2
        %v648 = vsel %vm609, %v645, %v647
        %649 = vrot.lane.b32.xlu0 %v646, 127
        %v650 = vpop.permute.xlu0 %649
        %651 = vrot.lane.b32.xlu0 %v648, 127
        %v652 = vpop.permute.xlu0 %651
        %v655 = vadd.f32 %v617, %v650
        %v656 = vadd.f32 %v618, %v652
        %s657 = sld [smem:[#allocation10 + $0x7]]
        %v658 = vstv %s657
        %v659 = vmul.f32 %v658, %v411
        %v660 = vmul.f32 %v658, %v412
        %v661 = vmul.f32 %v658, %v413
        %v665 = vrot.slane %v659, 2
        %v666 = vrot.slane %v660, 2
        %v667 = vsel %vm609, %v665, %v666
        %v668 = vrot.slane %v661, 2
        %v669 = vsel %vm609, %v666, %v668
        %670 = vrot.lane.b32.xlu0 %v667, 127
        %v671 = vpop.permute.xlu0 %670
        %672 = vrot.lane.b32.xlu0 %v669, 127
        %v673 = vpop.permute.xlu0 %672
        %v676 = vadd.f32 %v634, %v671
        %v677 = vadd.f32 %v635, %v673
        %s678 = sld [smem:[#allocation9 + $0x8]]
        %v679 = vstv %s678
        %v680 = vmul.f32 %v679, %v411
        %v681 = vmul.f32 %v679, %v412
        %v682 = vmul.f32 %v679, %v413
        %v686 = vrot.slane %v680, 2
        %v687 = vrot.slane %v681, 2
        %v688 = vsel %vm609, %v686, %v687
        %v689 = vrot.slane %v682, 2
        %v690 = vsel %vm609, %v687, %v689
        %691 = vrot.lane.b32.xlu0 %v688, 126
        %v692 = vpop.permute.xlu0 %691
        %693 = vrot.lane.b32.xlu0 %v690, 126
        %v694 = vpop.permute.xlu0 %693
        %v697 = vadd.f32 %v655, %v692
        %v698 = vadd.f32 %v656, %v694
        %s699 = sld [smem:[#allocation10 + $0x8]]
        %v700 = vstv %s699
        %v701 = vmul.f32 %v700, %v411
        %v702 = vmul.f32 %v700, %v412
        %v703 = vmul.f32 %v700, %v413
        %v707 = vrot.slane %v701, 2
        %v708 = vrot.slane %v702, 2
        %v709 = vsel %vm609, %v707, %v708
        %v710 = vrot.slane %v703, 2
        %v711 = vsel %vm609, %v708, %v710
        %712 = vrot.lane.b32.xlu0 %v709, 126
        %v713 = vpop.permute.xlu0 %712
        %714 = vrot.lane.b32.xlu0 %v711, 126
        %v715 = vpop.permute.xlu0 %714
        %v718 = vadd.f32 %v676, %v713
        %v719 = vadd.f32 %v677, %v715
        %722 = vrot.lane.b32.xlu0 %v697, 1
        %v723 = vpop.permute.xlu0 %722
        %724 = vrot.lane.b32.xlu0 %v698, 1
        %v725 = vpop.permute.xlu0 %724
        %728 = vst.msk [vmem:[#allocation3] sm:$0xff] %vm408, %v723
        %729 = vst.msk [vmem:[#allocation3 + $0x8] sm:$0xff] %vm408, %v725
        %730 = vst.msk [vmem:[#allocation4 + $0x1] sm:$0xff] %vm381, %v718
        %731 = vst.msk [vmem:[#allocation4 + $0x9] sm:$0xff] %vm381, %v719
        %v732 = vld [vmem:[#allocation3] sm:$0xff]
        %v733 = vld [vmem:[#allocation3 + $0x8] sm:$0xff]
        %v734 = vld [vmem:[#allocation4] sm:$0xff]
        %v735 = vld [vmem:[#allocation4 + $0x8] sm:$0xff]
        %v736 = vld [vmem:[#allocation4 + $0x10] sm:$0x3]
        %s737 = sld [smem:[#allocation12]]
        %v738 = vstv %s737
        %v739 = vmul.f32 %v738, %v732
        %v740 = vmul.f32 %v738, %v733
        %v741 = vadd.f32 %v388, %v739
        %v742 = vadd.f32 %v388, %v740
        %s743 = sld [smem:[#allocation12 + $0xc]]
        %v744 = vstv %s743
        %v745 = vmul.f32 %v744, %v732
        %v746 = vmul.f32 %v744, %v733
        %v747 = vadd.f32 %v391, %v745
        %v748 = vadd.f32 %v391, %v746
        %s749 = sld [smem:[#allocation12 + $0x1]]
        %v750 = vstv %s749
        %v751 = vmul.f32 %v750, %v732
        %v752 = vmul.f32 %v750, %v733
        %755 = vrot.lane.b32.xlu0 %v751, 127
        %v756 = vpop.permute.xlu0 %755
        %757 = vrot.lane.b32.xlu0 %v752, 127
        %v758 = vpop.permute.xlu0 %757
        %v761 = vadd.f32 %v741, %v756
        %v762 = vadd.f32 %v742, %v758
        %s763 = sld [smem:[#allocation12 + $0xd]]
        %v764 = vstv %s763
        %v765 = vmul.f32 %v764, %v732
        %v766 = vmul.f32 %v764, %v733
        %769 = vrot.lane.b32.xlu0 %v765, 127
        %v770 = vpop.permute.xlu0 %769
        %771 = vrot.lane.b32.xlu0 %v766, 127
        %v772 = vpop.permute.xlu0 %771
        %v775 = vadd.f32 %v747, %v770
        %v776 = vadd.f32 %v748, %v772
        %s777 = sld [smem:[#allocation12 + $0x2]]
        %v778 = vstv %s777
        %v779 = vmul.f32 %v778, %v732
        %v780 = vmul.f32 %v778, %v733
        %783 = vrot.lane.b32.xlu0 %v779, 126
        %v784 = vpop.permute.xlu0 %783
        %785 = vrot.lane.b32.xlu0 %v780, 126
        %v786 = vpop.permute.xlu0 %785
        %v789 = vadd.f32 %v761, %v784
        %v790 = vadd.f32 %v762, %v786
        %s791 = sld [smem:[#allocation12 + $0xe]]
        %v792 = vstv %s791
        %v793 = vmul.f32 %v792, %v732
        %v794 = vmul.f32 %v792, %v733
        %797 = vrot.lane.b32.xlu0 %v793, 126
        %v798 = vpop.permute.xlu0 %797
        %799 = vrot.lane.b32.xlu0 %v794, 126
        %v800 = vpop.permute.xlu0 %799
        %v803 = vadd.f32 %v775, %v798
        %v804 = vadd.f32 %v776, %v800
        %s805 = sld [smem:[#allocation13]]
        %v806 = vstv %s805
        %v807 = vmul.f32 %v806, %v734
        %v808 = vmul.f32 %v806, %v735
        %v809 = vadd.f32 %v394, %v807
        %v810 = vadd.f32 %v394, %v808
        %s811 = sld [smem:[#allocation13 + $0xc]]
        %v812 = vstv %s811
        %v813 = vmul.f32 %v812, %v734
        %v814 = vmul.f32 %v812, %v735
        %v815 = vadd.f32 %v397, %v813
        %v816 = vadd.f32 %v397, %v814
        %s817 = sld [smem:[#allocation13 + $0x1]]
        %v818 = vstv %s817
        %v819 = vmul.f32 %v818, %v734
        %v820 = vmul.f32 %v818, %v735
        %v821 = vmul.f32 %v818, %v736
        %v825 = vrot.slane %v819, 1
        %v826 = vrot.slane %v820, 1
        %v827 = vsel %vm490, %v825, %v826
        %v828 = vrot.slane %v821, 1
        %v829 = vsel %vm490, %v826, %v828
        %v832 = vadd.f32 %v809, %v827
        %v833 = vadd.f32 %v810, %v829
        %s834 = sld [smem:[#allocation13 + $0xd]]
        %v835 = vstv %s834
        %v836 = vmul.f32 %v835, %v734
        %v837 = vmul.f32 %v835, %v735
        %v838 = vmul.f32 %v835, %v736
        %v842 = vrot.slane %v836, 1
        %v843 = vrot.slane %v837, 1
        %v844 = vsel %vm490, %v842, %v843
        %v845 = vrot.slane %v838, 1
        %v846 = vsel %vm490, %v843, %v845
        %v849 = vadd.f32 %v815, %v844
        %v850 = vadd.f32 %v816, %v846
        %s851 = sld [smem:[#allocation13 + $0x2]]
        %v852 = vstv %s851
        %v853 = vmul.f32 %v852, %v734
        %v854 = vmul.f32 %v852, %v735
        %v855 = vmul.f32 %v852, %v736
        %v859 = vrot.slane %v853, 2
        %v860 = vrot.slane %v854, 2
        %v861 = vsel %vm609, %v859, %v860
        %v862 = vrot.slane %v855, 2
        %v863 = vsel %vm609, %v860, %v862
        %v866 = vadd.f32 %v832, %v861
        %v867 = vadd.f32 %v833, %v863
        %s868 = sld [smem:[#allocation13 + $0xe]]
        %v869 = vstv %s868
        %v870 = vmul.f32 %v869, %v734
        %v871 = vmul.f32 %v869, %v735
        %v872 = vmul.f32 %v869, %v736
        %v876 = vrot.slane %v870, 2
        %v877 = vrot.slane %v871, 2
        %v878 = vsel %vm609, %v876, %v877
        %v879 = vrot.slane %v872, 2
        %v880 = vsel %vm609, %v877, %v879
        %v883 = vadd.f32 %v849, %v878
        %v884 = vadd.f32 %v850, %v880
        %s885 = scalar_lea.vmem %s318, 16 [#allocation5]
        %v886 = vld [vmem:[%s885] sm:$0xff]
        %v887 = vld [vmem:[%s885 + $0x8] sm:$0xff]
        %890 = vrot.lane.b32.xlu0 %v886, 1
        %v891 = vpop.permute.xlu0 %890
        %892 = vrot.lane.b32.xlu0 %v887, 1
        %v893 = vpop.permute.xlu0 %892
        %896 = vst.msk [vmem:[#allocation2 + $0x1] sm:$0xff] %vm408, %v891
        %897 = vst.msk [vmem:[#allocation2 + $0x9] sm:$0xff] %vm408, %v893
        %v898 = vld [vmem:[#allocation2] sm:$0xff]
        %v899 = vld [vmem:[#allocation2 + $0x8] sm:$0xff]
        %v900 = vld [vmem:[#allocation2 + $0x10] sm:$0x3]
        %s901 = sld [smem:[#allocation9 + $0x9]]
        %v902 = vstv %s901
        %v903 = vmul.f32 %v902, %v898
        %v904 = vmul.f32 %v902, %v899
        %v905 = vadd.f32 %v903, 0.0
        %v906 = vadd.f32 %v904, 0.0
        %s907 = sld [smem:[#allocation10 + $0x9]]
        %v908 = vstv %s907
        %v909 = vmul.f32 %v908, %v898
        %v910 = vmul.f32 %v908, %v899
        %v911 = vadd.f32 %v909, 0.0
        %v912 = vadd.f32 %v910, 0.0
        %s913 = sld [smem:[#allocation9 + $0xa]]
        %v914 = vstv %s913
        %v915 = vmul.f32 %v914, %v898
        %v916 = vmul.f32 %v914, %v899
        %919 = vrot.lane.b32.xlu0 %v915, 127
        %v920 = vpop.permute.xlu0 %919
        %921 = vrot.lane.b32.xlu0 %v916, 127
        %v922 = vpop.permute.xlu0 %921
        %v925 = vadd.f32 %v905, %v920
        %v926 = vadd.f32 %v906, %v922
        %s927 = sld [smem:[#allocation10 + $0xa]]
        %v928 = vstv %s927
        %v929 = vmul.f32 %v928, %v898
        %v930 = vmul.f32 %v928, %v899
        %933 = vrot.lane.b32.xlu0 %v929, 127
        %v934 = vpop.permute.xlu0 %933
        %935 = vrot.lane.b32.xlu0 %v930, 127
        %v936 = vpop.permute.xlu0 %935
        %v939 = vadd.f32 %v911, %v934
        %v940 = vadd.f32 %v912, %v936
        %s941 = sld [smem:[#allocation9 + $0xb]]
        %v942 = vstv %s941
        %v943 = vmul.f32 %v942, %v898
        %v944 = vmul.f32 %v942, %v899
        %947 = vrot.lane.b32.xlu0 %v943, 126
        %v948 = vpop.permute.xlu0 %947
        %949 = vrot.lane.b32.xlu0 %v944, 126
        %v950 = vpop.permute.xlu0 %949
        %v953 = vadd.f32 %v925, %v948
        %v954 = vadd.f32 %v926, %v950
        %s955 = sld [smem:[#allocation10 + $0xb]]
        %v956 = vstv %s955
        %v957 = vmul.f32 %v956, %v898
        %v958 = vmul.f32 %v956, %v899
        %961 = vrot.lane.b32.xlu0 %v957, 126
        %v962 = vpop.permute.xlu0 %961
        %963 = vrot.lane.b32.xlu0 %v958, 126
        %v964 = vpop.permute.xlu0 %963
        %v967 = vadd.f32 %v939, %v962
        %v968 = vadd.f32 %v940, %v964
        %s969 = sld [smem:[#allocation9 + $0xc]]
        %v970 = vstv %s969
        %v971 = vmul.f32 %v970, %v898
        %v972 = vmul.f32 %v970, %v899
        %v973 = vmul.f32 %v970, %v900
        %v977 = vrot.slane %v971, 1
        %v978 = vrot.slane %v972, 1
        %v979 = vsel %vm490, %v977, %v978
        %v980 = vrot.slane %v973, 1
        %v981 = vsel %vm490, %v978, %v980
        %v984 = vadd.f32 %v953, %v979
        %v985 = vadd.f32 %v954, %v981
        %s986 = sld [smem:[#allocation10 + $0xc]]
        %v987 = vstv %s986
        %v988 = vmul.f32 %v987, %v898
        %v989 = vmul.f32 %v987, %v899
        %v990 = vmul.f32 %v987, %v900
        %v994 = vrot.slane %v988, 1
        %v995 = vrot.slane %v989, 1
        %v996 = vsel %vm490, %v994, %v995
        %v997 = vrot.slane %v990, 1
        %v998 = vsel %vm490, %v995, %v997
        %v1001 = vadd.f32 %v967, %v996
        %v1002 = vadd.f32 %v968, %v998
        %s1003 = sld [smem:[#allocation9 + $0xd]]
        %v1004 = vstv %s1003
        %v1005 = vmul.f32 %v1004, %v898
        %v1006 = vmul.f32 %v1004, %v899
        %v1007 = vmul.f32 %v1004, %v900
        %v1011 = vrot.slane %v1005, 1
        %v1012 = vrot.slane %v1006, 1
        %v1013 = vsel %vm490, %v1011, %v1012
        %v1014 = vrot.slane %v1007, 1
        %v1015 = vsel %vm490, %v1012, %v1014
        %1016 = vrot.lane.b32.xlu0 %v1013, 127
        %v1017 = vpop.permute.xlu0 %1016
        %1018 = vrot.lane.b32.xlu0 %v1015, 127
        %v1019 = vpop.permute.xlu0 %1018
        %v1022 = vadd.f32 %v984, %v1017
        %v1023 = vadd.f32 %v985, %v1019
        %s1024 = sld [smem:[#allocation10 + $0xd]]
        %v1025 = vstv %s1024
        %v1026 = vmul.f32 %v1025, %v898
        %v1027 = vmul.f32 %v1025, %v899
        %v1028 = vmul.f32 %v1025, %v900
        %v1032 = vrot.slane %v1026, 1
        %v1033 = vrot.slane %v1027, 1
        %v1034 = vsel %vm490, %v1032, %v1033
        %v1035 = vrot.slane %v1028, 1
        %v1036 = vsel %vm490, %v1033, %v1035
        %1037 = vrot.lane.b32.xlu0 %v1034, 127
        %v1038 = vpop.permute.xlu0 %1037
        %1039 = vrot.lane.b32.xlu0 %v1036, 127
        %v1040 = vpop.permute.xlu0 %1039
        %v1043 = vadd.f32 %v1001, %v1038
        %v1044 = vadd.f32 %v1002, %v1040
        %s1045 = sld [smem:[#allocation9 + $0xe]]
        %v1046 = vstv %s1045
        %v1047 = vmul.f32 %v1046, %v898
        %v1048 = vmul.f32 %v1046, %v899
        %v1049 = vmul.f32 %v1046, %v900
        %v1053 = vrot.slane %v1047, 1
        %v1054 = vrot.slane %v1048, 1
        %v1055 = vsel %vm490, %v1053, %v1054
        %v1056 = vrot.slane %v1049, 1
        %v1057 = vsel %vm490, %v1054, %v1056
        %1058 = vrot.lane.b32.xlu0 %v1055, 126
        %v1059 = vpop.permute.xlu0 %1058
        %1060 = vrot.lane.b32.xlu0 %v1057, 126
        %v1061 = vpop.permute.xlu0 %1060
        %v1064 = vadd.f32 %v1022, %v1059
        %v1065 = vadd.f32 %v1023, %v1061
        %s1066 = sld [smem:[#allocation10 + $0xe]]
        %v1067 = vstv %s1066
        %v1068 = vmul.f32 %v1067, %v898
        %v1069 = vmul.f32 %v1067, %v899
        %v1070 = vmul.f32 %v1067, %v900
        %v1074 = vrot.slane %v1068, 1
        %v1075 = vrot.slane %v1069, 1
        %v1076 = vsel %vm490, %v1074, %v1075
        %v1077 = vrot.slane %v1070, 1
        %v1078 = vsel %vm490, %v1075, %v1077
        %1079 = vrot.lane.b32.xlu0 %v1076, 126
        %v1080 = vpop.permute.xlu0 %1079
        %1081 = vrot.lane.b32.xlu0 %v1078, 126
        %v1082 = vpop.permute.xlu0 %1081
        %v1085 = vadd.f32 %v1043, %v1080
        %v1086 = vadd.f32 %v1044, %v1082
        %s1087 = sld [smem:[#allocation9 + $0xf]]
        %v1088 = vstv %s1087
        %v1089 = vmul.f32 %v1088, %v898
        %v1090 = vmul.f32 %v1088, %v899
        %v1091 = vmul.f32 %v1088, %v900
        %v1095 = vrot.slane %v1089, 2
        %v1096 = vrot.slane %v1090, 2
        %v1097 = vsel %vm609, %v1095, %v1096
        %v1098 = vrot.slane %v1091, 2
        %v1099 = vsel %vm609, %v1096, %v1098
        %v1102 = vadd.f32 %v1064, %v1097
        %v1103 = vadd.f32 %v1065, %v1099
        %s1104 = sld [smem:[#allocation10 + $0xf]]
        %v1105 = vstv %s1104
        %v1106 = vmul.f32 %v1105, %v898
        %v1107 = vmul.f32 %v1105, %v899
        %v1108 = vmul.f32 %v1105, %v900
        %v1112 = vrot.slane %v1106, 2
        %v1113 = vrot.slane %v1107, 2
        %v1114 = vsel %vm609, %v1112, %v1113
        %v1115 = vrot.slane %v1108, 2
        %v1116 = vsel %vm609, %v1113, %v1115
        %v1119 = vadd.f32 %v1085, %v1114
        %v1120 = vadd.f32 %v1086, %v1116
        %s1121 = sld [smem:[#allocation9 + $0x10]]
        %v1122 = vstv %s1121
        %v1123 = vmul.f32 %v1122, %v898
        %v1124 = vmul.f32 %v1122, %v899
        %v1125 = vmul.f32 %v1122, %v900
        %v1129 = vrot.slane %v1123, 2
        %v1130 = vrot.slane %v1124, 2
        %v1131 = vsel %vm609, %v1129, %v1130
        %v1132 = vrot.slane %v1125, 2
        %v1133 = vsel %vm609, %v1130, %v1132
        %1134 = vrot.lane.b32.xlu0 %v1131, 127
        %v1135 = vpop.permute.xlu0 %1134
        %1136 = vrot.lane.b32.xlu0 %v1133, 127
        %v1137 = vpop.permute.xlu0 %1136
        %v1140 = vadd.f32 %v1102, %v1135
        %v1141 = vadd.f32 %v1103, %v1137
        %s1142 = sld [smem:[#allocation10 + $0x10]]
        %v1143 = vstv %s1142
        %v1144 = vmul.f32 %v1143, %v898
        %v1145 = vmul.f32 %v1143, %v899
        %v1146 = vmul.f32 %v1143, %v900
        %v1150 = vrot.slane %v1144, 2
        %v1151 = vrot.slane %v1145, 2
        %v1152 = vsel %vm609, %v1150, %v1151
        %v1153 = vrot.slane %v1146, 2
        %v1154 = vsel %vm609, %v1151, %v1153
        %1155 = vrot.lane.b32.xlu0 %v1152, 127
        %v1156 = vpop.permute.xlu0 %1155
        %1157 = vrot.lane.b32.xlu0 %v1154, 127
        %v1158 = vpop.permute.xlu0 %1157
        %v1161 = vadd.f32 %v1119, %v1156
        %v1162 = vadd.f32 %v1120, %v1158
        %s1163 = sld [smem:[#allocation9 + $0x11]]
        %v1164 = vstv %s1163
        %v1165 = vmul.f32 %v1164, %v898
        %v1166 = vmul.f32 %v1164, %v899
        %v1167 = vmul.f32 %v1164, %v900
        %v1171 = vrot.slane %v1165, 2
        %v1172 = vrot.slane %v1166, 2
        %v1173 = vsel %vm609, %v1171, %v1172
        %v1174 = vrot.slane %v1167, 2
        %v1175 = vsel %vm609, %v1172, %v1174
        %1176 = vrot.lane.b32.xlu0 %v1173, 126
        %v1177 = vpop.permute.xlu0 %1176
        %1178 = vrot.lane.b32.xlu0 %v1175, 126
        %v1179 = vpop.permute.xlu0 %1178
        %v1182 = vadd.f32 %v1140, %v1177
        %v1183 = vadd.f32 %v1141, %v1179
        %s1184 = sld [smem:[#allocation10 + $0x11]]
        %v1185 = vstv %s1184
        %v1186 = vmul.f32 %v1185, %v898
        %v1187 = vmul.f32 %v1185, %v899
        %v1188 = vmul.f32 %v1185, %v900
        %v1192 = vrot.slane %v1186, 2
        %v1193 = vrot.slane %v1187, 2
        %v1194 = vsel %vm609, %v1192, %v1193
        %v1195 = vrot.slane %v1188, 2
        %v1196 = vsel %vm609, %v1193, %v1195
        %1197 = vrot.lane.b32.xlu0 %v1194, 126
        %v1198 = vpop.permute.xlu0 %1197
        %1199 = vrot.lane.b32.xlu0 %v1196, 126
        %v1200 = vpop.permute.xlu0 %1199
        %v1203 = vadd.f32 %v1161, %v1198
        %v1204 = vadd.f32 %v1162, %v1200
        %1207 = vrot.lane.b32.xlu0 %v1182, 1
        %v1208 = vpop.permute.xlu0 %1207
        %1209 = vrot.lane.b32.xlu0 %v1183, 1
        %v1210 = vpop.permute.xlu0 %1209
        %1213 = vst.msk [vmem:[#allocation3] sm:$0xff] %vm408, %v1208
        %1214 = vst.msk [vmem:[#allocation3 + $0x8] sm:$0xff] %vm408, %v1210
        %1215 = vst.msk [vmem:[#allocation4 + $0x1] sm:$0xff] %vm381, %v1203
        %1216 = vst.msk [vmem:[#allocation4 + $0x9] sm:$0xff] %vm381, %v1204
        %v1217 = vld [vmem:[#allocation3] sm:$0xff]
        %v1218 = vld [vmem:[#allocation3 + $0x8] sm:$0xff]
        %v1219 = vld [vmem:[#allocation4] sm:$0xff]
        %v1220 = vld [vmem:[#allocation4 + $0x8] sm:$0xff]
        %v1221 = vld [vmem:[#allocation4 + $0x10] sm:$0x3]
        %s1222 = sld [smem:[#allocation12 + $0x3]]
        %v1223 = vstv %s1222
        %v1224 = vmul.f32 %v1223, %v1217
        %v1225 = vmul.f32 %v1223, %v1218
        %v1226 = vadd.f32 %v789, %v1224
        %v1227 = vadd.f32 %v790, %v1225
        %s1228 = sld [smem:[#allocation12 + $0xf]]
        %v1229 = vstv %s1228
        %v1230 = vmul.f32 %v1229, %v1217
        %v1231 = vmul.f32 %v1229, %v1218
        %v1232 = vadd.f32 %v803, %v1230
        %v1233 = vadd.f32 %v804, %v1231
        %s1234 = sld [smem:[#allocation12 + $0x4]]
        %v1235 = vstv %s1234
        %v1236 = vmul.f32 %v1235, %v1217
        %v1237 = vmul.f32 %v1235, %v1218
        %1240 = vrot.lane.b32.xlu0 %v1236, 127
        %v1241 = vpop.permute.xlu0 %1240
        %1242 = vrot.lane.b32.xlu0 %v1237, 127
        %v1243 = vpop.permute.xlu0 %1242
        %v1246 = vadd.f32 %v1226, %v1241
        %v1247 = vadd.f32 %v1227, %v1243
        %s1248 = sld [smem:[#allocation12 + $0x10]]
        %v1249 = vstv %s1248
        %v1250 = vmul.f32 %v1249, %v1217
        %v1251 = vmul.f32 %v1249, %v1218
        %1254 = vrot.lane.b32.xlu0 %v1250, 127
        %v1255 = vpop.permute.xlu0 %1254
        %1256 = vrot.lane.b32.xlu0 %v1251, 127
        %v1257 = vpop.permute.xlu0 %1256
        %v1260 = vadd.f32 %v1232, %v1255
        %v1261 = vadd.f32 %v1233, %v1257
        %s1262 = sld [smem:[#allocation12 + $0x5]]
        %v1263 = vstv %s1262
        %v1264 = vmul.f32 %v1263, %v1217
        %v1265 = vmul.f32 %v1263, %v1218
        %1268 = vrot.lane.b32.xlu0 %v1264, 126
        %v1269 = vpop.permute.xlu0 %1268
        %1270 = vrot.lane.b32.xlu0 %v1265, 126
        %v1271 = vpop.permute.xlu0 %1270
        %v1274 = vadd.f32 %v1246, %v1269
        %v1275 = vadd.f32 %v1247, %v1271
        %s1276 = sld [smem:[#allocation12 + $0x11]]
        %v1277 = vstv %s1276
        %v1278 = vmul.f32 %v1277, %v1217
        %v1279 = vmul.f32 %v1277, %v1218
        %1282 = vrot.lane.b32.xlu0 %v1278, 126
        %v1283 = vpop.permute.xlu0 %1282
        %1284 = vrot.lane.b32.xlu0 %v1279, 126
        %v1285 = vpop.permute.xlu0 %1284
        %v1288 = vadd.f32 %v1260, %v1283
        %v1289 = vadd.f32 %v1261, %v1285
        %s1290 = sld [smem:[#allocation13 + $0x3]]
        %v1291 = vstv %s1290
        %v1292 = vmul.f32 %v1291, %v1219
        %v1293 = vmul.f32 %v1291, %v1220
        %v1294 = vadd.f32 %v866, %v1292
        %v1295 = vadd.f32 %v867, %v1293
        %s1296 = sld [smem:[#allocation13 + $0xf]]
        %v1297 = vstv %s1296
        %v1298 = vmul.f32 %v1297, %v1219
        %v1299 = vmul.f32 %v1297, %v1220
        %v1300 = vadd.f32 %v883, %v1298
        %v1301 = vadd.f32 %v884, %v1299
        %s1302 = sld [smem:[#allocation13 + $0x4]]
        %v1303 = vstv %s1302
        %v1304 = vmul.f32 %v1303, %v1219
        %v1305 = vmul.f32 %v1303, %v1220
        %v1306 = vmul.f32 %v1303, %v1221
        %v1310 = vrot.slane %v1304, 1
        %v1311 = vrot.slane %v1305, 1
        %v1312 = vsel %vm490, %v1310, %v1311
        %v1313 = vrot.slane %v1306, 1
        %v1314 = vsel %vm490, %v1311, %v1313
        %v1317 = vadd.f32 %v1294, %v1312
        %v1318 = vadd.f32 %v1295, %v1314
        %s1319 = sld [smem:[#allocation13 + $0x10]]
        %v1320 = vstv %s1319
        %v1321 = vmul.f32 %v1320, %v1219
        %v1322 = vmul.f32 %v1320, %v1220
        %v1323 = vmul.f32 %v1320, %v1221
        %v1327 = vrot.slane %v1321, 1
        %v1328 = vrot.slane %v1322, 1
        %v1329 = vsel %vm490, %v1327, %v1328
        %v1330 = vrot.slane %v1323, 1
        %v1331 = vsel %vm490, %v1328, %v1330
        %v1334 = vadd.f32 %v1300, %v1329
        %v1335 = vadd.f32 %v1301, %v1331
        %s1336 = sld [smem:[#allocation13 + $0x5]]
        %v1337 = vstv %s1336
        %v1338 = vmul.f32 %v1337, %v1219
        %v1339 = vmul.f32 %v1337, %v1220
        %v1340 = vmul.f32 %v1337, %v1221
        %v1344 = vrot.slane %v1338, 2
        %v1345 = vrot.slane %v1339, 2
        %v1346 = vsel %vm609, %v1344, %v1345
        %v1347 = vrot.slane %v1340, 2
        %v1348 = vsel %vm609, %v1345, %v1347
        %v1351 = vadd.f32 %v1317, %v1346
        %v1352 = vadd.f32 %v1318, %v1348
        %s1353 = sld [smem:[#allocation13 + $0x11]]
        %v1354 = vstv %s1353
        %v1355 = vmul.f32 %v1354, %v1219
        %v1356 = vmul.f32 %v1354, %v1220
        %v1357 = vmul.f32 %v1354, %v1221
        %v1361 = vrot.slane %v1355, 2
        %v1362 = vrot.slane %v1356, 2
        %v1363 = vsel %vm609, %v1361, %v1362
        %v1364 = vrot.slane %v1357, 2
        %v1365 = vsel %vm609, %v1362, %v1364
        %v1368 = vadd.f32 %v1334, %v1363
        %v1369 = vadd.f32 %v1335, %v1365
        %s1370 = scalar_lea.vmem %s318, 32 [#allocation5]
        %v1371 = vld [vmem:[%s1370] sm:$0xff]
        %v1372 = vld [vmem:[%s1370 + $0x8] sm:$0xff]
        %1375 = vrot.lane.b32.xlu0 %v1371, 1
        %v1376 = vpop.permute.xlu0 %1375
        %1377 = vrot.lane.b32.xlu0 %v1372, 1
        %v1378 = vpop.permute.xlu0 %1377
        %1381 = vst.msk [vmem:[#allocation2 + $0x1] sm:$0xff] %vm408, %v1376
        %1382 = vst.msk [vmem:[#allocation2 + $0x9] sm:$0xff] %vm408, %v1378
        %v1383 = vld [vmem:[#allocation2] sm:$0xff]
        %v1384 = vld [vmem:[#allocation2 + $0x8] sm:$0xff]
        %v1385 = vld [vmem:[#allocation2 + $0x10] sm:$0x3]
        %s1386 = sld [smem:[#allocation9 + $0x12]]
        %v1387 = vstv %s1386
        %v1388 = vmul.f32 %v1387, %v1383
        %v1389 = vmul.f32 %v1387, %v1384
        %v1390 = vadd.f32 %v1388, 0.0
        %v1391 = vadd.f32 %v1389, 0.0
        %s1392 = sld [smem:[#allocation10 + $0x12]]
        %v1393 = vstv %s1392
        %v1394 = vmul.f32 %v1393, %v1383
        %v1395 = vmul.f32 %v1393, %v1384
        %v1396 = vadd.f32 %v1394, 0.0
        %v1397 = vadd.f32 %v1395, 0.0
        %s1398 = sld [smem:[#allocation9 + $0x13]]
        %v1399 = vstv %s1398
        %v1400 = vmul.f32 %v1399, %v1383
        %v1401 = vmul.f32 %v1399, %v1384
        %1404 = vrot.lane.b32.xlu0 %v1400, 127
        %v1405 = vpop.permute.xlu0 %1404
        %1406 = vrot.lane.b32.xlu0 %v1401, 127
        %v1407 = vpop.permute.xlu0 %1406
        %v1410 = vadd.f32 %v1390, %v1405
        %v1411 = vadd.f32 %v1391, %v1407
        %s1412 = sld [smem:[#allocation10 + $0x13]]
        %v1413 = vstv %s1412
        %v1414 = vmul.f32 %v1413, %v1383
        %v1415 = vmul.f32 %v1413, %v1384
        %1418 = vrot.lane.b32.xlu0 %v1414, 127
        %v1419 = vpop.permute.xlu0 %1418
        %1420 = vrot.lane.b32.xlu0 %v1415, 127
        %v1421 = vpop.permute.xlu0 %1420
        %v1424 = vadd.f32 %v1396, %v1419
        %v1425 = vadd.f32 %v1397, %v1421
        %s1426 = sld [smem:[#allocation9 + $0x14]]
        %v1427 = vstv %s1426
        %v1428 = vmul.f32 %v1427, %v1383
        %v1429 = vmul.f32 %v1427, %v1384
        %1432 = vrot.lane.b32.xlu0 %v1428, 126
        %v1433 = vpop.permute.xlu0 %1432
        %1434 = vrot.lane.b32.xlu0 %v1429, 126
        %v1435 = vpop.permute.xlu0 %1434
        %v1438 = vadd.f32 %v1410, %v1433
        %v1439 = vadd.f32 %v1411, %v1435
        %s1440 = sld [smem:[#allocation10 + $0x14]]
        %v1441 = vstv %s1440
        %v1442 = vmul.f32 %v1441, %v1383
        %v1443 = vmul.f32 %v1441, %v1384
        %1446 = vrot.lane.b32.xlu0 %v1442, 126
        %v1447 = vpop.permute.xlu0 %1446
        %1448 = vrot.lane.b32.xlu0 %v1443, 126
        %v1449 = vpop.permute.xlu0 %1448
        %v1452 = vadd.f32 %v1424, %v1447
        %v1453 = vadd.f32 %v1425, %v1449
        %s1454 = sld [smem:[#allocation9 + $0x15]]
        %v1455 = vstv %s1454
        %v1456 = vmul.f32 %v1455, %v1383
        %v1457 = vmul.f32 %v1455, %v1384
        %v1458 = vmul.f32 %v1455, %v1385
        %v1462 = vrot.slane %v1456, 1
        %v1463 = vrot.slane %v1457, 1
        %v1464 = vsel %vm490, %v1462, %v1463
        %v1465 = vrot.slane %v1458, 1
        %v1466 = vsel %vm490, %v1463, %v1465
        %v1469 = vadd.f32 %v1438, %v1464
        %v1470 = vadd.f32 %v1439, %v1466
        %s1471 = sld [smem:[#allocation10 + $0x15]]
        %v1472 = vstv %s1471
        %v1473 = vmul.f32 %v1472, %v1383
        %v1474 = vmul.f32 %v1472, %v1384
        %v1475 = vmul.f32 %v1472, %v1385
        %v1479 = vrot.slane %v1473, 1
        %v1480 = vrot.slane %v1474, 1
        %v1481 = vsel %vm490, %v1479, %v1480
        %v1482 = vrot.slane %v1475, 1
        %v1483 = vsel %vm490, %v1480, %v1482
        %v1486 = vadd.f32 %v1452, %v1481
        %v1487 = vadd.f32 %v1453, %v1483
        %s1488 = sld [smem:[#allocation9 + $0x16]]
        %v1489 = vstv %s1488
        %v1490 = vmul.f32 %v1489, %v1383
        %v1491 = vmul.f32 %v1489, %v1384
        %v1492 = vmul.f32 %v1489, %v1385
        %v1496 = vrot.slane %v1490, 1
        %v1497 = vrot.slane %v1491, 1
        %v1498 = vsel %vm490, %v1496, %v1497
        %v1499 = vrot.slane %v1492, 1
        %v1500 = vsel %vm490, %v1497, %v1499
        %1501 = vrot.lane.b32.xlu0 %v1498, 127
        %v1502 = vpop.permute.xlu0 %1501
        %1503 = vrot.lane.b32.xlu0 %v1500, 127
        %v1504 = vpop.permute.xlu0 %1503
        %v1507 = vadd.f32 %v1469, %v1502
        %v1508 = vadd.f32 %v1470, %v1504
        %s1509 = sld [smem:[#allocation10 + $0x16]]
        %v1510 = vstv %s1509
        %v1511 = vmul.f32 %v1510, %v1383
        %v1512 = vmul.f32 %v1510, %v1384
        %v1513 = vmul.f32 %v1510, %v1385
        %v1517 = vrot.slane %v1511, 1
        %v1518 = vrot.slane %v1512, 1
        %v1519 = vsel %vm490, %v1517, %v1518
        %v1520 = vrot.slane %v1513, 1
        %v1521 = vsel %vm490, %v1518, %v1520
        %1522 = vrot.lane.b32.xlu0 %v1519, 127
        %v1523 = vpop.permute.xlu0 %1522
        %1524 = vrot.lane.b32.xlu0 %v1521, 127
        %v1525 = vpop.permute.xlu0 %1524
        %v1528 = vadd.f32 %v1486, %v1523
        %v1529 = vadd.f32 %v1487, %v1525
        %s1530 = sld [smem:[#allocation9 + $0x17]]
        %v1531 = vstv %s1530
        %v1532 = vmul.f32 %v1531, %v1383
        %v1533 = vmul.f32 %v1531, %v1384
        %v1534 = vmul.f32 %v1531, %v1385
        %v1538 = vrot.slane %v1532, 1
        %v1539 = vrot.slane %v1533, 1
        %v1540 = vsel %vm490, %v1538, %v1539
        %v1541 = vrot.slane %v1534, 1
        %v1542 = vsel %vm490, %v1539, %v1541
        %1543 = vrot.lane.b32.xlu0 %v1540, 126
        %v1544 = vpop.permute.xlu0 %1543
        %1545 = vrot.lane.b32.xlu0 %v1542, 126
        %v1546 = vpop.permute.xlu0 %1545
        %v1549 = vadd.f32 %v1507, %v1544
        %v1550 = vadd.f32 %v1508, %v1546
        %s1551 = sld [smem:[#allocation10 + $0x17]]
        %v1552 = vstv %s1551
        %v1553 = vmul.f32 %v1552, %v1383
        %v1554 = vmul.f32 %v1552, %v1384
        %v1555 = vmul.f32 %v1552, %v1385
        %v1559 = vrot.slane %v1553, 1
        %v1560 = vrot.slane %v1554, 1
        %v1561 = vsel %vm490, %v1559, %v1560
        %v1562 = vrot.slane %v1555, 1
        %v1563 = vsel %vm490, %v1560, %v1562
        %1564 = vrot.lane.b32.xlu0 %v1561, 126
        %v1565 = vpop.permute.xlu0 %1564
        %1566 = vrot.lane.b32.xlu0 %v1563, 126
        %v1567 = vpop.permute.xlu0 %1566
        %v1570 = vadd.f32 %v1528, %v1565
        %v1571 = vadd.f32 %v1529, %v1567
        %s1572 = sld [smem:[#allocation9 + $0x18]]
        %v1573 = vstv %s1572
        %v1574 = vmul.f32 %v1573, %v1383
        %v1575 = vmul.f32 %v1573, %v1384
        %v1576 = vmul.f32 %v1573, %v1385
        %v1580 = vrot.slane %v1574, 2
        %v1581 = vrot.slane %v1575, 2
        %v1582 = vsel %vm609, %v1580, %v1581
        %v1583 = vrot.slane %v1576, 2
        %v1584 = vsel %vm609, %v1581, %v1583
        %v1587 = vadd.f32 %v1549, %v1582
        %v1588 = vadd.f32 %v1550, %v1584
        %s1589 = sld [smem:[#allocation10 + $0x18]]
        %v1590 = vstv %s1589
        %v1591 = vmul.f32 %v1590, %v1383
        %v1592 = vmul.f32 %v1590, %v1384
        %v1593 = vmul.f32 %v1590, %v1385
        %v1597 = vrot.slane %v1591, 2
        %v1598 = vrot.slane %v1592, 2
        %v1599 = vsel %vm609, %v1597, %v1598
        %v1600 = vrot.slane %v1593, 2
        %v1601 = vsel %vm609, %v1598, %v1600
        %v1604 = vadd.f32 %v1570, %v1599
        %v1605 = vadd.f32 %v1571, %v1601
        %s1606 = sld [smem:[#allocation9 + $0x19]]
        %v1607 = vstv %s1606
        %v1608 = vmul.f32 %v1607, %v1383
        %v1609 = vmul.f32 %v1607, %v1384
        %v1610 = vmul.f32 %v1607, %v1385
        %v1614 = vrot.slane %v1608, 2
        %v1615 = vrot.slane %v1609, 2
        %v1616 = vsel %vm609, %v1614, %v1615
        %v1617 = vrot.slane %v1610, 2
        %v1618 = vsel %vm609, %v1615, %v1617
        %1619 = vrot.lane.b32.xlu0 %v1616, 127
        %v1620 = vpop.permute.xlu0 %1619
        %1621 = vrot.lane.b32.xlu0 %v1618, 127
        %v1622 = vpop.permute.xlu0 %1621
        %v1625 = vadd.f32 %v1587, %v1620
        %v1626 = vadd.f32 %v1588, %v1622
        %s1627 = sld [smem:[#allocation10 + $0x19]]
        %v1628 = vstv %s1627
        %v1629 = vmul.f32 %v1628, %v1383
        %v1630 = vmul.f32 %v1628, %v1384
        %v1631 = vmul.f32 %v1628, %v1385
        %v1635 = vrot.slane %v1629, 2
        %v1636 = vrot.slane %v1630, 2
        %v1637 = vsel %vm609, %v1635, %v1636
        %v1638 = vrot.slane %v1631, 2
        %v1639 = vsel %vm609, %v1636, %v1638
        %1640 = vrot.lane.b32.xlu0 %v1637, 127
        %v1641 = vpop.permute.xlu0 %1640
        %1642 = vrot.lane.b32.xlu0 %v1639, 127
        %v1643 = vpop.permute.xlu0 %1642
        %v1646 = vadd.f32 %v1604, %v1641
        %v1647 = vadd.f32 %v1605, %v1643
        %s1648 = sld [smem:[#allocation9 + $0x1a]]
        %v1649 = vstv %s1648
        %v1650 = vmul.f32 %v1649, %v1383
        %v1651 = vmul.f32 %v1649, %v1384
        %v1652 = vmul.f32 %v1649, %v1385
        %v1656 = vrot.slane %v1650, 2
        %v1657 = vrot.slane %v1651, 2
        %v1658 = vsel %vm609, %v1656, %v1657
        %v1659 = vrot.slane %v1652, 2
        %v1660 = vsel %vm609, %v1657, %v1659
        %1661 = vrot.lane.b32.xlu0 %v1658, 126
        %v1662 = vpop.permute.xlu0 %1661
        %1663 = vrot.lane.b32.xlu0 %v1660, 126
        %v1664 = vpop.permute.xlu0 %1663
        %v1667 = vadd.f32 %v1625, %v1662
        %v1668 = vadd.f32 %v1626, %v1664
        %s1669 = sld [smem:[#allocation10 + $0x1a]]
        %v1670 = vstv %s1669
        %v1671 = vmul.f32 %v1670, %v1383
        %v1672 = vmul.f32 %v1670, %v1384
        %v1673 = vmul.f32 %v1670, %v1385
        %v1677 = vrot.slane %v1671, 2
        %v1678 = vrot.slane %v1672, 2
        %v1679 = vsel %vm609, %v1677, %v1678
        %v1680 = vrot.slane %v1673, 2
        %v1681 = vsel %vm609, %v1678, %v1680
        %1682 = vrot.lane.b32.xlu0 %v1679, 126
        %v1683 = vpop.permute.xlu0 %1682
        %1684 = vrot.lane.b32.xlu0 %v1681, 126
        %v1685 = vpop.permute.xlu0 %1684
        %v1688 = vadd.f32 %v1646, %v1683
        %v1689 = vadd.f32 %v1647, %v1685
        %1692 = vrot.lane.b32.xlu0 %v1667, 1
        %v1693 = vpop.permute.xlu0 %1692
        %1694 = vrot.lane.b32.xlu0 %v1668, 1
        %v1695 = vpop.permute.xlu0 %1694
        %1698 = vst.msk [vmem:[#allocation3] sm:$0xff] %vm408, %v1693
        %1699 = vst.msk [vmem:[#allocation3 + $0x8] sm:$0xff] %vm408, %v1695
        %1700 = vst.msk [vmem:[#allocation4 + $0x1] sm:$0xff] %vm381, %v1688
        %1701 = vst.msk [vmem:[#allocation4 + $0x9] sm:$0xff] %vm381, %v1689
        %v1702 = vld [vmem:[#allocation3] sm:$0xff]
        %v1703 = vld [vmem:[#allocation3 + $0x8] sm:$0xff]
        %v1704 = vld [vmem:[#allocation4] sm:$0xff]
        %v1705 = vld [vmem:[#allocation4 + $0x8] sm:$0xff]
        %v1706 = vld [vmem:[#allocation4 + $0x10] sm:$0x3]
        %s1707 = sld [smem:[#allocation12 + $0x6]]
        %v1708 = vstv %s1707
        %v1709 = vmul.f32 %v1708, %v1702
        %v1710 = vmul.f32 %v1708, %v1703
        %v1711 = vadd.f32 %v1274, %v1709
        %v1712 = vadd.f32 %v1275, %v1710
        %s1713 = sld [smem:[#allocation12 + $0x12]]
        %v1714 = vstv %s1713
        %v1715 = vmul.f32 %v1714, %v1702
        %v1716 = vmul.f32 %v1714, %v1703
        %v1717 = vadd.f32 %v1288, %v1715
        %v1718 = vadd.f32 %v1289, %v1716
        %s1719 = sld [smem:[#allocation12 + $0x7]]
        %v1720 = vstv %s1719
        %v1721 = vmul.f32 %v1720, %v1702
        %v1722 = vmul.f32 %v1720, %v1703
        %1725 = vrot.lane.b32.xlu0 %v1721, 127
        %v1726 = vpop.permute.xlu0 %1725
        %1727 = vrot.lane.b32.xlu0 %v1722, 127
        %v1728 = vpop.permute.xlu0 %1727
        %v1731 = vadd.f32 %v1711, %v1726
        %v1732 = vadd.f32 %v1712, %v1728
        %s1733 = sld [smem:[#allocation12 + $0x13]]
        %v1734 = vstv %s1733
        %v1735 = vmul.f32 %v1734, %v1702
        %v1736 = vmul.f32 %v1734, %v1703
        %1739 = vrot.lane.b32.xlu0 %v1735, 127
        %v1740 = vpop.permute.xlu0 %1739
        %1741 = vrot.lane.b32.xlu0 %v1736, 127
        %v1742 = vpop.permute.xlu0 %1741
        %v1745 = vadd.f32 %v1717, %v1740
        %v1746 = vadd.f32 %v1718, %v1742
        %s1747 = sld [smem:[#allocation12 + $0x8]]
        %v1748 = vstv %s1747
        %v1749 = vmul.f32 %v1748, %v1702
        %v1750 = vmul.f32 %v1748, %v1703
        %1753 = vrot.lane.b32.xlu0 %v1749, 126
        %v1754 = vpop.permute.xlu0 %1753
        %1755 = vrot.lane.b32.xlu0 %v1750, 126
        %v1756 = vpop.permute.xlu0 %1755
        %v1759 = vadd.f32 %v1731, %v1754
        %v1760 = vadd.f32 %v1732, %v1756
        %s1761 = sld [smem:[#allocation12 + $0x14]]
        %v1762 = vstv %s1761
        %v1763 = vmul.f32 %v1762, %v1702
        %v1764 = vmul.f32 %v1762, %v1703
        %1767 = vrot.lane.b32.xlu0 %v1763, 126
        %v1768 = vpop.permute.xlu0 %1767
        %1769 = vrot.lane.b32.xlu0 %v1764, 126
        %v1770 = vpop.permute.xlu0 %1769
        %v1773 = vadd.f32 %v1745, %v1768
        %v1774 = vadd.f32 %v1746, %v1770
        %s1775 = sld [smem:[#allocation13 + $0x6]]
        %v1776 = vstv %s1775
        %v1777 = vmul.f32 %v1776, %v1704
        %v1778 = vmul.f32 %v1776, %v1705
        %v1779 = vadd.f32 %v1351, %v1777
        %v1780 = vadd.f32 %v1352, %v1778
        %s1781 = sld [smem:[#allocation13 + $0x12]]
        %v1782 = vstv %s1781
        %v1783 = vmul.f32 %v1782, %v1704
        %v1784 = vmul.f32 %v1782, %v1705
        %v1785 = vadd.f32 %v1368, %v1783
        %v1786 = vadd.f32 %v1369, %v1784
        %s1787 = sld [smem:[#allocation13 + $0x7]]
        %v1788 = vstv %s1787
        %v1789 = vmul.f32 %v1788, %v1704
        %v1790 = vmul.f32 %v1788, %v1705
        %v1791 = vmul.f32 %v1788, %v1706
        %v1795 = vrot.slane %v1789, 1
        %v1796 = vrot.slane %v1790, 1
        %v1797 = vsel %vm490, %v1795, %v1796
        %v1798 = vrot.slane %v1791, 1
        %v1799 = vsel %vm490, %v1796, %v1798
        %v1802 = vadd.f32 %v1779, %v1797
        %v1803 = vadd.f32 %v1780, %v1799
        %s1804 = sld [smem:[#allocation13 + $0x13]]
        %v1805 = vstv %s1804
        %v1806 = vmul.f32 %v1805, %v1704
        %v1807 = vmul.f32 %v1805, %v1705
        %v1808 = vmul.f32 %v1805, %v1706
        %v1812 = vrot.slane %v1806, 1
        %v1813 = vrot.slane %v1807, 1
        %v1814 = vsel %vm490, %v1812, %v1813
        %v1815 = vrot.slane %v1808, 1
        %v1816 = vsel %vm490, %v1813, %v1815
        %v1819 = vadd.f32 %v1785, %v1814
        %v1820 = vadd.f32 %v1786, %v1816
        %s1821 = sld [smem:[#allocation13 + $0x8]]
        %v1822 = vstv %s1821
        %v1823 = vmul.f32 %v1822, %v1704
        %v1824 = vmul.f32 %v1822, %v1705
        %v1825 = vmul.f32 %v1822, %v1706
        %v1829 = vrot.slane %v1823, 2
        %v1830 = vrot.slane %v1824, 2
        %v1831 = vsel %vm609, %v1829, %v1830
        %v1832 = vrot.slane %v1825, 2
        %v1833 = vsel %vm609, %v1830, %v1832
        %v1836 = vadd.f32 %v1802, %v1831
        %v1837 = vadd.f32 %v1803, %v1833
        %s1838 = sld [smem:[#allocation13 + $0x14]]
        %v1839 = vstv %s1838
        %v1840 = vmul.f32 %v1839, %v1704
        %v1841 = vmul.f32 %v1839, %v1705
        %v1842 = vmul.f32 %v1839, %v1706
        %v1846 = vrot.slane %v1840, 2
        %v1847 = vrot.slane %v1841, 2
        %v1848 = vsel %vm609, %v1846, %v1847
        %v1849 = vrot.slane %v1842, 2
        %v1850 = vsel %vm609, %v1847, %v1849
        %v1853 = vadd.f32 %v1819, %v1848
        %v1854 = vadd.f32 %v1820, %v1850
        %s1855 = scalar_lea.vmem %s318, 48 [#allocation5]
        %v1856 = vld [vmem:[%s1855] sm:$0xff]
        %v1857 = vld [vmem:[%s1855 + $0x8] sm:$0xff]
        %1860 = vrot.lane.b32.xlu0 %v1856, 1
        %v1861 = vpop.permute.xlu0 %1860
        %1862 = vrot.lane.b32.xlu0 %v1857, 1
        %v1863 = vpop.permute.xlu0 %1862
        %1866 = vst.msk [vmem:[#allocation2 + $0x1] sm:$0xff] %vm408, %v1861
        %1867 = vst.msk [vmem:[#allocation2 + $0x9] sm:$0xff] %vm408, %v1863
        %v1868 = vld [vmem:[#allocation2] sm:$0xff]
        %v1869 = vld [vmem:[#allocation2 + $0x8] sm:$0xff]
        %v1870 = vld [vmem:[#allocation2 + $0x10] sm:$0x3]
        %s1871 = sld [smem:[#allocation9 + $0x1b]]
        %v1872 = vstv %s1871
        %v1873 = vmul.f32 %v1872, %v1868
        %v1874 = vmul.f32 %v1872, %v1869
        %v1875 = vadd.f32 %v1873, 0.0
        %v1876 = vadd.f32 %v1874, 0.0
        %s1877 = sld [smem:[#allocation10 + $0x1b]]
        %v1878 = vstv %s1877
        %v1879 = vmul.f32 %v1878, %v1868
        %v1880 = vmul.f32 %v1878, %v1869
        %v1881 = vadd.f32 %v1879, 0.0
        %v1882 = vadd.f32 %v1880, 0.0
        %s1883 = sld [smem:[#allocation9 + $0x1c]]
        %v1884 = vstv %s1883
        %v1885 = vmul.f32 %v1884, %v1868
        %v1886 = vmul.f32 %v1884, %v1869
        %1889 = vrot.lane.b32.xlu0 %v1885, 127
        %v1890 = vpop.permute.xlu0 %1889
        %1891 = vrot.lane.b32.xlu0 %v1886, 127
        %v1892 = vpop.permute.xlu0 %1891
        %v1895 = vadd.f32 %v1875, %v1890
        %v1896 = vadd.f32 %v1876, %v1892
        %s1897 = sld [smem:[#allocation10 + $0x1c]]
        %v1898 = vstv %s1897
        %v1899 = vmul.f32 %v1898, %v1868
        %v1900 = vmul.f32 %v1898, %v1869
        %1903 = vrot.lane.b32.xlu0 %v1899, 127
        %v1904 = vpop.permute.xlu0 %1903
        %1905 = vrot.lane.b32.xlu0 %v1900, 127
        %v1906 = vpop.permute.xlu0 %1905
        %v1909 = vadd.f32 %v1881, %v1904
        %v1910 = vadd.f32 %v1882, %v1906
        %s1911 = sld [smem:[#allocation9 + $0x1d]]
        %v1912 = vstv %s1911
        %v1913 = vmul.f32 %v1912, %v1868
        %v1914 = vmul.f32 %v1912, %v1869
        %1917 = vrot.lane.b32.xlu0 %v1913, 126
        %v1918 = vpop.permute.xlu0 %1917
        %1919 = vrot.lane.b32.xlu0 %v1914, 126
        %v1920 = vpop.permute.xlu0 %1919
        %v1923 = vadd.f32 %v1895, %v1918
        %v1924 = vadd.f32 %v1896, %v1920
        %s1925 = sld [smem:[#allocation10 + $0x1d]]
        %v1926 = vstv %s1925
        %v1927 = vmul.f32 %v1926, %v1868
        %v1928 = vmul.f32 %v1926, %v1869
        %1931 = vrot.lane.b32.xlu0 %v1927, 126
        %v1932 = vpop.permute.xlu0 %1931
        %1933 = vrot.lane.b32.xlu0 %v1928, 126
        %v1934 = vpop.permute.xlu0 %1933
        %v1937 = vadd.f32 %v1909, %v1932
        %v1938 = vadd.f32 %v1910, %v1934
        %s1939 = sld [smem:[#allocation9 + $0x1e]]
        %v1940 = vstv %s1939
        %v1941 = vmul.f32 %v1940, %v1868
        %v1942 = vmul.f32 %v1940, %v1869
        %v1943 = vmul.f32 %v1940, %v1870
        %v1947 = vrot.slane %v1941, 1
        %v1948 = vrot.slane %v1942, 1
        %v1949 = vsel %vm490, %v1947, %v1948
        %v1950 = vrot.slane %v1943, 1
        %v1951 = vsel %vm490, %v1948, %v1950
        %v1954 = vadd.f32 %v1923, %v1949
        %v1955 = vadd.f32 %v1924, %v1951
        %s1956 = sld [smem:[#allocation10 + $0x1e]]
        %v1957 = vstv %s1956
        %v1958 = vmul.f32 %v1957, %v1868
        %v1959 = vmul.f32 %v1957, %v1869
        %v1960 = vmul.f32 %v1957, %v1870
        %v1964 = vrot.slane %v1958, 1
        %v1965 = vrot.slane %v1959, 1
        %v1966 = vsel %vm490, %v1964, %v1965
        %v1967 = vrot.slane %v1960, 1
        %v1968 = vsel %vm490, %v1965, %v1967
        %v1971 = vadd.f32 %v1937, %v1966
        %v1972 = vadd.f32 %v1938, %v1968
        %s1973 = sld [smem:[#allocation9 + $0x1f]]
        %v1974 = vstv %s1973
        %v1975 = vmul.f32 %v1974, %v1868
        %v1976 = vmul.f32 %v1974, %v1869
        %v1977 = vmul.f32 %v1974, %v1870
        %v1981 = vrot.slane %v1975, 1
        %v1982 = vrot.slane %v1976, 1
        %v1983 = vsel %vm490, %v1981, %v1982
        %v1984 = vrot.slane %v1977, 1
        %v1985 = vsel %vm490, %v1982, %v1984
        %1986 = vrot.lane.b32.xlu0 %v1983, 127
        %v1987 = vpop.permute.xlu0 %1986
        %1988 = vrot.lane.b32.xlu0 %v1985, 127
        %v1989 = vpop.permute.xlu0 %1988
        %v1992 = vadd.f32 %v1954, %v1987
        %v1993 = vadd.f32 %v1955, %v1989
        %s1994 = sld [smem:[#allocation10 + $0x1f]]
        %v1995 = vstv %s1994
        %v1996 = vmul.f32 %v1995, %v1868
        %v1997 = vmul.f32 %v1995, %v1869
        %v1998 = vmul.f32 %v1995, %v1870
        %v2002 = vrot.slane %v1996, 1
        %v2003 = vrot.slane %v1997, 1
        %v2004 = vsel %vm490, %v2002, %v2003
        %v2005 = vrot.slane %v1998, 1
        %v2006 = vsel %vm490, %v2003, %v2005
        %2007 = vrot.lane.b32.xlu0 %v2004, 127
        %v2008 = vpop.permute.xlu0 %2007
        %2009 = vrot.lane.b32.xlu0 %v2006, 127
        %v2010 = vpop.permute.xlu0 %2009
        %v2013 = vadd.f32 %v1971, %v2008
        %v2014 = vadd.f32 %v1972, %v2010
        %s2015 = sld [smem:[#allocation9 + $0x20]]
        %v2016 = vstv %s2015
        %v2017 = vmul.f32 %v2016, %v1868
        %v2018 = vmul.f32 %v2016, %v1869
        %v2019 = vmul.f32 %v2016, %v1870
        %v2023 = vrot.slane %v2017, 1
        %v2024 = vrot.slane %v2018, 1
        %v2025 = vsel %vm490, %v2023, %v2024
        %v2026 = vrot.slane %v2019, 1
        %v2027 = vsel %vm490, %v2024, %v2026
        %2028 = vrot.lane.b32.xlu0 %v2025, 126
        %v2029 = vpop.permute.xlu0 %2028
        %2030 = vrot.lane.b32.xlu0 %v2027, 126
        %v2031 = vpop.permute.xlu0 %2030
        %v2034 = vadd.f32 %v1992, %v2029
        %v2035 = vadd.f32 %v1993, %v2031
        %s2036 = sld [smem:[#allocation10 + $0x20]]
        %v2037 = vstv %s2036
        %v2038 = vmul.f32 %v2037, %v1868
        %v2039 = vmul.f32 %v2037, %v1869
        %v2040 = vmul.f32 %v2037, %v1870
        %v2044 = vrot.slane %v2038, 1
        %v2045 = vrot.slane %v2039, 1
        %v2046 = vsel %vm490, %v2044, %v2045
        %v2047 = vrot.slane %v2040, 1
        %v2048 = vsel %vm490, %v2045, %v2047
        %2049 = vrot.lane.b32.xlu0 %v2046, 126
        %v2050 = vpop.permute.xlu0 %2049
        %2051 = vrot.lane.b32.xlu0 %v2048, 126
        %v2052 = vpop.permute.xlu0 %2051
        %v2055 = vadd.f32 %v2013, %v2050
        %v2056 = vadd.f32 %v2014, %v2052
        %s2057 = sld [smem:[#allocation9 + $0x21]]
        %v2058 = vstv %s2057
        %v2059 = vmul.f32 %v2058, %v1868
        %v2060 = vmul.f32 %v2058, %v1869
        %v2061 = vmul.f32 %v2058, %v1870
        %v2065 = vrot.slane %v2059, 2
        %v2066 = vrot.slane %v2060, 2
        %v2067 = vsel %vm609, %v2065, %v2066
        %v2068 = vrot.slane %v2061, 2
        %v2069 = vsel %vm609, %v2066, %v2068
        %v2072 = vadd.f32 %v2034, %v2067
        %v2073 = vadd.f32 %v2035, %v2069
        %s2074 = sld [smem:[#allocation10 + $0x21]]
        %v2075 = vstv %s2074
        %v2076 = vmul.f32 %v2075, %v1868
        %v2077 = vmul.f32 %v2075, %v1869
        %v2078 = vmul.f32 %v2075, %v1870
        %v2082 = vrot.slane %v2076, 2
        %v2083 = vrot.slane %v2077, 2
        %v2084 = vsel %vm609, %v2082, %v2083
        %v2085 = vrot.slane %v2078, 2
        %v2086 = vsel %vm609, %v2083, %v2085
        %v2089 = vadd.f32 %v2055, %v2084
        %v2090 = vadd.f32 %v2056, %v2086
        %s2091 = sld [smem:[#allocation9 + $0x22]]
        %v2092 = vstv %s2091
        %v2093 = vmul.f32 %v2092, %v1868
        %v2094 = vmul.f32 %v2092, %v1869
        %v2095 = vmul.f32 %v2092, %v1870
        %v2099 = vrot.slane %v2093, 2
        %v2100 = vrot.slane %v2094, 2
        %v2101 = vsel %vm609, %v2099, %v2100
        %v2102 = vrot.slane %v2095, 2
        %v2103 = vsel %vm609, %v2100, %v2102
        %2104 = vrot.lane.b32.xlu0 %v2101, 127
        %v2105 = vpop.permute.xlu0 %2104
        %2106 = vrot.lane.b32.xlu0 %v2103, 127
        %v2107 = vpop.permute.xlu0 %2106
        %v2110 = vadd.f32 %v2072, %v2105
        %v2111 = vadd.f32 %v2073, %v2107
        %s2112 = sld [smem:[#allocation10 + $0x22]]
        %v2113 = vstv %s2112
        %v2114 = vmul.f32 %v2113, %v1868
        %v2115 = vmul.f32 %v2113, %v1869
        %v2116 = vmul.f32 %v2113, %v1870
        %v2120 = vrot.slane %v2114, 2
        %v2121 = vrot.slane %v2115, 2
        %v2122 = vsel %vm609, %v2120, %v2121
        %v2123 = vrot.slane %v2116, 2
        %v2124 = vsel %vm609, %v2121, %v2123
        %2125 = vrot.lane.b32.xlu0 %v2122, 127
        %v2126 = vpop.permute.xlu0 %2125
        %2127 = vrot.lane.b32.xlu0 %v2124, 127
        %v2128 = vpop.permute.xlu0 %2127
        %v2131 = vadd.f32 %v2089, %v2126
        %v2132 = vadd.f32 %v2090, %v2128
        %s2133 = sld [smem:[#allocation9 + $0x23]]
        %v2134 = vstv %s2133
        %v2135 = vmul.f32 %v2134, %v1868
        %v2136 = vmul.f32 %v2134, %v1869
        %v2137 = vmul.f32 %v2134, %v1870
        %v2141 = vrot.slane %v2135, 2
        %v2142 = vrot.slane %v2136, 2
        %v2143 = vsel %vm609, %v2141, %v2142
        %v2144 = vrot.slane %v2137, 2
        %v2145 = vsel %vm609, %v2142, %v2144
        %2146 = vrot.lane.b32.xlu0 %v2143, 126
        %v2147 = vpop.permute.xlu0 %2146
        %2148 = vrot.lane.b32.xlu0 %v2145, 126
        %v2149 = vpop.permute.xlu0 %2148
        %v2152 = vadd.f32 %v2110, %v2147
        %v2153 = vadd.f32 %v2111, %v2149
        %s2154 = sld [smem:[#allocation10 + $0x23]]
        %v2155 = vstv %s2154
        %v2156 = vmul.f32 %v2155, %v1868
        %v2157 = vmul.f32 %v2155, %v1869
        %v2158 = vmul.f32 %v2155, %v1870
        %v2162 = vrot.slane %v2156, 2
        %v2163 = vrot.slane %v2157, 2
        %v2164 = vsel %vm609, %v2162, %v2163
        %v2165 = vrot.slane %v2158, 2
        %v2166 = vsel %vm609, %v2163, %v2165
        %2167 = vrot.lane.b32.xlu0 %v2164, 126
        %v2168 = vpop.permute.xlu0 %2167
        %2169 = vrot.lane.b32.xlu0 %v2166, 126
        %v2170 = vpop.permute.xlu0 %2169
        %v2173 = vadd.f32 %v2131, %v2168
        %v2174 = vadd.f32 %v2132, %v2170
        %2177 = vrot.lane.b32.xlu0 %v2152, 1
        %v2178 = vpop.permute.xlu0 %2177
        %2179 = vrot.lane.b32.xlu0 %v2153, 1
        %v2180 = vpop.permute.xlu0 %2179
        %2183 = vst.msk [vmem:[#allocation3] sm:$0xff] %vm408, %v2178
        %2184 = vst.msk [vmem:[#allocation3 + $0x8] sm:$0xff] %vm408, %v2180
        %2185 = vst.msk [vmem:[#allocation4 + $0x1] sm:$0xff] %vm381, %v2173
        %2186 = vst.msk [vmem:[#allocation4 + $0x9] sm:$0xff] %vm381, %v2174
        %v2187 = vld [vmem:[#allocation3] sm:$0xff]
        %v2188 = vld [vmem:[#allocation3 + $0x8] sm:$0xff]
        %v2189 = vld [vmem:[#allocation4] sm:$0xff]
        %v2190 = vld [vmem:[#allocation4 + $0x8] sm:$0xff]
        %v2191 = vld [vmem:[#allocation4 + $0x10] sm:$0x3]
        %s2192 = sld [smem:[#allocation12 + $0x9]]
        %v2193 = vstv %s2192
        %v2194 = vmul.f32 %v2193, %v2187
        %v2195 = vmul.f32 %v2193, %v2188
        %v2196 = vadd.f32 %v1759, %v2194
        %v2197 = vadd.f32 %v1760, %v2195
        %s2198 = sld [smem:[#allocation12 + $0x15]]
        %v2199 = vstv %s2198
        %v2200 = vmul.f32 %v2199, %v2187
        %v2201 = vmul.f32 %v2199, %v2188
        %v2202 = vadd.f32 %v1773, %v2200
        %v2203 = vadd.f32 %v1774, %v2201
        %s2204 = sld [smem:[#allocation12 + $0xa]]
        %v2205 = vstv %s2204
        %v2206 = vmul.f32 %v2205, %v2187
        %v2207 = vmul.f32 %v2205, %v2188
        %2210 = vrot.lane.b32.xlu0 %v2206, 127
        %v2211 = vpop.permute.xlu0 %2210
        %2212 = vrot.lane.b32.xlu0 %v2207, 127
        %v2213 = vpop.permute.xlu0 %2212
        %v2216 = vadd.f32 %v2196, %v2211
        %v2217 = vadd.f32 %v2197, %v2213
        %s2218 = sld [smem:[#allocation12 + $0x16]]
        %v2219 = vstv %s2218
        %v2220 = vmul.f32 %v2219, %v2187
        %v2221 = vmul.f32 %v2219, %v2188
        %2224 = vrot.lane.b32.xlu0 %v2220, 127
        %v2225 = vpop.permute.xlu0 %2224
        %2226 = vrot.lane.b32.xlu0 %v2221, 127
        %v2227 = vpop.permute.xlu0 %2226
        %v2230 = vadd.f32 %v2202, %v2225
        %v2231 = vadd.f32 %v2203, %v2227
        %s2232 = sld [smem:[#allocation12 + $0xb]]
        %v2233 = vstv %s2232
        %v2234 = vmul.f32 %v2233, %v2187
        %v2235 = vmul.f32 %v2233, %v2188
        %2238 = vrot.lane.b32.xlu0 %v2234, 126
        %v2239 = vpop.permute.xlu0 %2238
        %2240 = vrot.lane.b32.xlu0 %v2235, 126
        %v2241 = vpop.permute.xlu0 %2240
        %v2244 = vadd.f32 %v2216, %v2239
        %v2245 = vadd.f32 %v2217, %v2241
        %s2246 = sld [smem:[#allocation12 + $0x17]]
        %v2247 = vstv %s2246
        %v2248 = vmul.f32 %v2247, %v2187
        %v2249 = vmul.f32 %v2247, %v2188
        %2252 = vrot.lane.b32.xlu0 %v2248, 126
        %v2253 = vpop.permute.xlu0 %2252
        %2254 = vrot.lane.b32.xlu0 %v2249, 126
        %v2255 = vpop.permute.xlu0 %2254
        %v2258 = vadd.f32 %v2230, %v2253
        %v2259 = vadd.f32 %v2231, %v2255
        %s2260 = sld [smem:[#allocation13 + $0x9]]
        %v2261 = vstv %s2260
        %v2262 = vmul.f32 %v2261, %v2189
        %v2263 = vmul.f32 %v2261, %v2190
        %v2264 = vadd.f32 %v1836, %v2262
        %v2265 = vadd.f32 %v1837, %v2263
        %s2266 = sld [smem:[#allocation13 + $0x15]]
        %v2267 = vstv %s2266
        %v2268 = vmul.f32 %v2267, %v2189
        %v2269 = vmul.f32 %v2267, %v2190
        %v2270 = vadd.f32 %v1853, %v2268
        %v2271 = vadd.f32 %v1854, %v2269
        %s2272 = sld [smem:[#allocation13 + $0xa]]
        %v2273 = vstv %s2272
        %v2274 = vmul.f32 %v2273, %v2189
        %v2275 = vmul.f32 %v2273, %v2190
        %v2276 = vmul.f32 %v2273, %v2191
        %v2280 = vrot.slane %v2274, 1
        %v2281 = vrot.slane %v2275, 1
        %v2282 = vsel %vm490, %v2280, %v2281
        %v2283 = vrot.slane %v2276, 1
        %v2284 = vsel %vm490, %v2281, %v2283
        %v2287 = vadd.f32 %v2264, %v2282
        %v2288 = vadd.f32 %v2265, %v2284
        %s2289 = sld [smem:[#allocation13 + $0x16]]
        %v2290 = vstv %s2289
        %v2291 = vmul.f32 %v2290, %v2189
        %v2292 = vmul.f32 %v2290, %v2190
        %v2293 = vmul.f32 %v2290, %v2191
        %v2297 = vrot.slane %v2291, 1
        %v2298 = vrot.slane %v2292, 1
        %v2299 = vsel %vm490, %v2297, %v2298
        %v2300 = vrot.slane %v2293, 1
        %v2301 = vsel %vm490, %v2298, %v2300
        %v2304 = vadd.f32 %v2270, %v2299
        %v2305 = vadd.f32 %v2271, %v2301
        %s2306 = sld [smem:[#allocation13 + $0xb]]
        %v2307 = vstv %s2306
        %v2308 = vmul.f32 %v2307, %v2189
        %v2309 = vmul.f32 %v2307, %v2190
        %v2310 = vmul.f32 %v2307, %v2191
        %v2314 = vrot.slane %v2308, 2
        %v2315 = vrot.slane %v2309, 2
        %v2316 = vsel %vm609, %v2314, %v2315
        %v2317 = vrot.slane %v2310, 2
        %v2318 = vsel %vm609, %v2315, %v2317
        %v2321 = vadd.f32 %v2287, %v2316
        %v2322 = vadd.f32 %v2288, %v2318
        %s2323 = sld [smem:[#allocation13 + $0x17]]
        %v2324 = vstv %s2323
        %v2325 = vmul.f32 %v2324, %v2189
        %v2326 = vmul.f32 %v2324, %v2190
        %v2327 = vmul.f32 %v2324, %v2191
        %v2331 = vrot.slane %v2325, 2
        %v2332 = vrot.slane %v2326, 2
        %v2333 = vsel %vm609, %v2331, %v2332
        %v2334 = vrot.slane %v2327, 2
        %v2335 = vsel %vm609, %v2332, %v2334
        %v2338 = vadd.f32 %v2304, %v2333
        %v2339 = vadd.f32 %v2305, %v2335
        %2340 = vst.msk [vmem:[%s373] sm:$0xff] %vm381, %v2244
        %2341 = vst.msk [vmem:[%s373 + $0x8] sm:$0xff] %vm381, %v2245
        %2342 = vst.msk [vmem:[%s373 + $0x10] sm:$0xff] %vm381, %v2321
        %2343 = vst.msk [vmem:[%s373 + $0x18] sm:$0xff] %vm381, %v2322
        %2344 = vst.msk [vmem:[%s373 + $0x20] sm:$0xff] %vm381, %v2258
        %2345 = vst.msk [vmem:[%s373 + $0x28] sm:$0xff] %vm381, %v2259
        %2346 = vst.msk [vmem:[%s373 + $0x30] sm:$0xff] %vm381, %v2338
        %2347 = vst.msk [vmem:[%s373 + $0x38] sm:$0xff] %vm381, %v2339
        %s2348 = sand.u32 %s188, 1
        %s2349 = scalar_lea.sflag [#allocation7], %s2348
        %s2350 = sand.u32 %s188, 1
        %s2351 = smul.addr %s2350, 64
        %s2352 = scalar_lea.vmem [#allocation18], %s2351
        // Predicated region
        $region77: #{tpu_custom_call.1} parent=47 // pred_check
          %p2353 = pneg %p198
        $region78: #{tpu_custom_call.1} parent=47 // pred_check_branch
          %2355 = sbr.rel (%p2353) target = $region80
        $region79: #{tpu_custom_call.1} parent=47 // pred_region
          %s2357 = ssub.s32 1024, 1024
          %2358 = vsyncadd %s2349, %s2357
          %s2359 = smul.addr %s28, 8
          %s2360 = smul.addr %s2359, 128
          %s2361 = scalar_lea.hbm %s7, %s2360
          %s2362 = sshll.u32 %s2352, 4
          %s2363 = int_to_ptr.vmem [resolvable:$true] %s2362
          %2368 = dma.vmem_to_hbm [thread:$0]  %s2363, 1024, %s2361, %s2349, 128, 128, 8
        $region80: #{tpu_custom_call.1} parent=47 // pred_fallthru
          _
      $region48: #{tpu_custom_call.1} parent=5 // pred_fallthru
        _
      %p2369 = scmp.le.s32.totalorder 2, %s23
      // Predicated region
      $region81: #{tpu_custom_call.1} parent=5 // pred_check
        %p2370 = pneg %p2369
      $region82: #{tpu_custom_call.1} parent=5 // pred_check_branch
        %2372 = sbr.rel (%p2370) target = $region84
      $region83: #{tpu_custom_call.1} parent=5 // pred_region
        %s2373 = ssub.s32 %s23, 2
        // Predicated region
        $region85: #{tpu_custom_call.1} parent=83 // pred_check
          %p2374 = pneg %p204
        $region86: #{tpu_custom_call.1} parent=83 // pred_check_branch
          %2376 = sbr.rel (%p2374) target = $region88
        $region87: #{tpu_custom_call.1} parent=83 // pred_region
          %s2377 = sand.u32 %s189, 1
          %s2378 = scalar_lea.sflag [#allocation7], %s2377
          %s2379 = sand.u32 %s189, 1
          %s2380 = smul.addr %s2379, 64
          %s2381 = scalar_lea.vmem [#allocation18], %s2380
          %2382 = dma.done %s2378, 1024
        $region88: #{tpu_custom_call.1} parent=83 // pred_fallthru
          _
      $region84: #{tpu_custom_call.1} parent=5 // pred_fallthru
        _
    $region6: #{tpu_custom_call.1} parent=1 // loop_footer
      %s27 = sadd.s32 1, %s23
    $region7: #{tpu_custom_call.1} parent=1 // loop_footer_branch
      %22 = sbr.rel target = $region3
    $region8: #{tpu_custom_call.1} parent=1 // loop_exit
      _
    %2383 = vsyncpa [#allocation6], 1
    %s2384 = scalar_lea.sflag [#allocation6], 1
    %2385 = vsyncpa %s2384, 1
    %2386 = vsyncpa [#allocation7], 1
    %s2387 = scalar_lea.sflag [#allocation7], 1
    %2388 = vsyncpa %s2387, 1
    %2389 = vsyncpa [#allocation8], 1
    %s2390 = scalar_lea.sflag [#allocation8], 1
    %2391 = vsyncpa %s2390, 1
    %2392 = vsyncpa [#allocation11], 1
    %2393 = vsyncpa [#allocation14], 1
    %2394 = vsyncpa [#allocation17], 1

</llo_original>
